<compile_context>
chip_gen: v7x
topology: tpu7x:2x2x1
jax: 0.10.0
libtpu: 0.0.40
codegen_flags: <defaults>
</compile_context>

<pallas_src>
import math
import functools

import jax
import jax.numpy as jnp
from jax import lax
from jax.experimental import pallas as pl
from jax.experimental.pallas import tpu as pltpu


def _round_up(x: int, m: int) -> int:
    return ((x + m - 1) // m) * m


def _sin_time_emb_kernel(freq_ref, phase_ref, time_ref, out_ref, *, pack: int):
    """One fused tile: args = t @ F (or t * F) + phase ; out = sin(args).

    pack == 1 : freq_ref (1, width)    time_ref (TM, 1)     out_ref (TM, width)
    pack  > 1 : freq_ref (pack, width) time_ref (TM, pack)  out_ref (TM, width)
    phase_ref : (1, width)  — 0 on sin lanes, pi/2 on cos lanes.
    All arithmetic in float32; single full-width store per tile.
    """
    t = time_ref[...]  # float32
    if pack == 1:
        # (TM, 1) * (1, width) broadcast multiply on the VPU.
        args = t * freq_ref[...]
    else:
        # Block-diagonal selection+scale matmul on the MXU. HIGHEST precision
        # keeps t (up to ~1e3) at full f32 mantissa; only one nonzero per
        # output lane so the accumulation itself is exact.
        args = jnp.dot(t, freq_ref[...],
                       precision=lax.Precision.HIGHEST,
                       preferred_element_type=jnp.float32)
    out_ref[...] = jnp.sin(args + phase_ref[...]).astype(out_ref.dtype)


def sinusoidal_time_embeddings(time: jax.Array, out_dim: int, *,
                               out_dtype=jnp.float32) -> jax.Array:
    """time: (num_nodes, 1) (or (num_nodes,)) -> (num_nodes, out_dim)."""
    if out_dim % 2 != 0 or out_dim < 4:
        raise ValueError(f"out_dim must be even and >= 4, got {out_dim}")

    half = out_dim // 2
    n = time.shape[0]
    time = time.reshape(n, 1).astype(jnp.float32)

    # Log-spaced inverse frequencies (same formula as the reference / PyTorch).
    scale = math.log(10000.0) / (half - 1)
    freqs = jnp.exp(jnp.arange(half, dtype=jnp.float32) * (-scale))   # (half,)
    freq_row = jnp.concatenate([freqs, freqs])                        # (out_dim,)

    # Lane packing: fold `pack` original rows into one lane-dense output row
    # (width multiple of 128). Keep pack >= 8 so the matmul K dim is
    # sublane-aligned; cap width to keep the resident F matrix tiny.
    if out_dim < 128:
        base = 128 // math.gcd(out_dim, 128)      # smallest pack with width%128==0
        pack = base * ((8 + base - 1) // base)    # round up to >= 8
        if pack * out_dim > 1024:
            pack = 1                              # rare awkward out_dim: masked stores
    else:
        pack = 1
    width = pack * out_dim

    # Pad rows so (a) n divides pack and (b) row count is sublane-aligned.
    rows = _round_up(pl.cdiv(n, pack), 8)
    n_pad = rows * pack
    if n_pad != n:
        time = jnp.pad(time, ((0, n_pad - n), (0, 0)))
    t_in = time.reshape(rows, pack)               # free row-major reshape

    # Phase row: 0 on sin lanes, pi/2 on cos lanes (cos(x) = sin(x + pi/2)).
    lane = jnp.arange(width, dtype=jnp.int32)
    phase = jnp.where((lane % out_dim) < half,
                      jnp.float32(0.0), jnp.float32(math.pi / 2.0)).reshape(1, width)

    if pack == 1:
        freq_in = freq_row.reshape(1, width)
    else:
        # Block-diagonal (pack, width): row j holds [freqs | freqs] in lanes
        # [j*out_dim, (j+1)*out_dim) and zeros elsewhere.
        freq_in = jnp.kron(jnp.eye(pack, dtype=jnp.float32),
                           freq_row.reshape(1, out_dim))

    # Tile sizing: ~4 MiB output block (double-buffered ~8 MiB, safe on every
    # generation's scoped-VMEM default incl. v5e 16 MiB / v7x), but keep >= 2-4
    # grid steps when rows allow so v7x's second TensorCore is used and DMA /
    # compute overlap.
    rows_cap = max(8, (((4 << 20) // (width * 4)) // 8) * 8)
    steps_cap = max(8, _round_up(pl.cdiv(rows, 4), 8))
    tm = min(rows, rows_cap, steps_cap)           # multiple of 8 (rows is too)
    grid = (pl.cdiv(rows, tm),)

    kernel = functools.partial(_sin_time_emb_kernel, pack=pack)

    out = pl.pallas_call(
        kernel,
        out_shape=jax.ShapeDtypeStruct((rows, width), out_dtype),
        grid=grid,
        in_specs=[
            # Tiny constant tables, resident across all grid steps.
            pl.BlockSpec(freq_in.shape, lambda i: (0, 0)),
            pl.BlockSpec((1, width), lambda i: (0, 0)),
            pl.BlockSpec((tm, pack), lambda i: (i, 0)),
        ],
        out_specs=pl.BlockSpec((tm, width), lambda i: (i, 0)),
        compiler_params=pltpu.CompilerParams(
            dimension_semantics=("parallel",)),   # shards rows over both TCs on v7x
    )(freq_in, phase, t_in)

    out = out.reshape(n_pad, out_dim)
    if n_pad != n:
        out = out[:n]
    return out


def _reference(time: jax.Array, out_dim: int) -> jax.Array:
    """Pure-JAX reference mirroring the PyTorch module."""
    half = out_dim // 2
    scale = math.log(10000.0) / (half - 1)
    freqs = jnp.exp(jnp.arange(half, dtype=jnp.float32) * (-scale))
    t = time.reshape(-1, 1).astype(jnp.float32)
    emb = t * freqs[None, :]
    return jnp.concatenate([jnp.sin(emb), jnp.cos(emb)], axis=-1)


if __name__ == "__main__":
    key = jax.random.PRNGKey(0)

    # (num_nodes, out_dim, out_dtype, atol). f32 tolerance is 2e-4 because
    # cos(x) is computed as sin(x + pi/2): for x up to ~1e3 the extra f32
    # rounding before range reduction contributes up to ~6e-5.
    configs = [
        (1024, 32, jnp.float32, 2e-4),    # lane-packed MXU path, multi-step grid
        (64, 256, jnp.float32, 2e-4),     # wide (out_dim >= 128) path, pack == 1
        (30, 32, jnp.float32, 2e-4),      # awkward n: pad -> pack -> slice back
        (1024, 32, jnp.bfloat16, 1e-2),   # bf16 writeback option (v5e roofline)
    ]

    for num_nodes, out_dim, out_dtype, atol in configs:
        key, sub = jax.random.split(key)
        time = jax.random.uniform(sub, (num_nodes, 1), dtype=jnp.float32,
                                  minval=0.0, maxval=1000.0)

        out = sinusoidal_time_embeddings(time, out_dim, out_dtype=out_dtype)
        out = jax.block_until_ready(out)

        ref = _reference(time, out_dim)
        assert out.shape == (num_nodes, out_dim), out.shape
        assert out.dtype == out_dtype, out.dtype
        assert jnp.allclose(out.astype(jnp.float32), ref, atol=atol, rtol=1e-5), (
            f"mismatch vs reference for n={num_nodes}, out_dim={out_dim}, "
            f"dtype={out_dtype}")

    print("KERNEL_OK")
</pallas_src>

<mosaic_0001>
module attributes {stable_mosaic.version = 11 : i64} {
  func.func @_sin_time_emb_kernel(%arg0: i32, %arg1: memref<8x256xf32, #tpu.memory_space<vmem>>, %arg2: memref<1x256xf32, #tpu.memory_space<vmem>>, %arg3: memref<32x8xf32, #tpu.memory_space<vmem>>, %arg4: memref<32x256xf32, #tpu.memory_space<vmem>>) attributes {dimension_semantics = [#tpu.dimension_semantics<parallel>], iteration_bounds = array<i64: 4>, scalar_prefetch = 0 : i64, scratch_operands = 0 : i64, tpu.core_type = #tpu.core_type<tc>, window_params = [{pipeline_mode = #tpu.pipeline_mode<synchronous>, transform_indices = @transform_0, window_bounds = array<i64: 8, 256>}, {pipeline_mode = #tpu.pipeline_mode<synchronous>, transform_indices = @transform_1, window_bounds = array<i64: 1, 256>}, {transform_indices = @transform_2, window_bounds = array<i64: 32, 8>}, {transform_indices = @transform_3, window_bounds = array<i64: 32, 256>}]} {
    %c0 = arith.constant 0 : index
    %c0_0 = arith.constant 0 : index
    %0 = vector.load %arg3[%c0, %c0_0] : memref<32x8xf32, #tpu.memory_space<vmem>>, vector<32x8xf32>
    %c0_1 = arith.constant 0 : index
    %c0_2 = arith.constant 0 : index
    %1 = vector.load %arg1[%c0_1, %c0_2] : memref<8x256xf32, #tpu.memory_space<vmem>>, vector<8x256xf32>
    %cst = arith.constant dense<0.000000e+00> : vector<32x256xf32>
    %2 = tpu.matmul %0, %1, %cst {dimension_numbers = #tpu.dot_dimension_numbers<[1], [0], [0], [1], [0, 0, 1, 1], [], []>, precision = #tpu.contract_precision<fp32>} : vector<32x8xf32>, vector<8x256xf32>, vector<32x256xf32> -> vector<32x256xf32>
    %c0_3 = arith.constant 0 : index
    %c0_4 = arith.constant 0 : index
    %3 = vector.load %arg2[%c0_3, %c0_4] : memref<1x256xf32, #tpu.memory_space<vmem>>, vector<1x256xf32>
    %4 = vector.broadcast %3 : vector<1x256xf32> to vector<32x256xf32>
    %5 = arith.addf %2, %4 : vector<32x256xf32>
    %6 = math.sin %5 : vector<32x256xf32>
    %c0_5 = arith.constant 0 : index
    %c0_6 = arith.constant 0 : index
    %7 = vector.load %arg4[%c0_5, %c0_6] : memref<32x256xf32, #tpu.memory_space<vmem>>, vector<32x256xf32>
    tpu.vector_store %arg4[%c0_5, %c0_6], %6 {strides = array<i32>} : memref<32x256xf32, #tpu.memory_space<vmem>>, vector<32x256xf32>,
    return
  }
  func.func @transform_0(%arg0: i32) -> (i32, i32) {
    %c0_i32 = arith.constant 0 : i32
    %c0_i32_0 = arith.constant 0 : i32
    %c0_i32_1 = arith.constant 0 : i32
    return %c0_i32, %c0_i32_0 : i32, i32
  }
  func.func @transform_1(%arg0: i32) -> (i32, i32) {
    %c0_i32 = arith.constant 0 : i32
    %c0_i32_0 = arith.constant 0 : i32
    %c0_i32_1 = arith.constant 0 : i32
    return %c0_i32, %c0_i32_0 : i32, i32
  }
  func.func @transform_2(%arg0: i32) -> (i32, i32) {
    %c0_i32 = arith.constant 0 : i32
    %c0_i32_0 = arith.constant 0 : i32
    return %arg0, %c0_i32 : i32, i32
  }
  func.func @transform_3(%arg0: i32) -> (i32, i32) {
    %c0_i32 = arith.constant 0 : i32
    %c0_i32_0 = arith.constant 0 : i32
    return %arg0, %c0_i32 : i32, i32
  }
}

</mosaic_0001>

<llo_original>
// kernel: tpu_custom_call.1
$region0: #{tpu_custom_call.1}
  #allocation0 [shape = 'u32[]', space=smem, size = 0x4, offset = 0x4, fixed_abs, tag = 'smem constant byte address 0x4 - core index']
  #allocation1 [shape = 'u32[144,128]{1,0:T(1,128)}', space=vmem, size = 0x12000, scoped, tag = 'internal scratch']
  %s0 = inlined_call_operand.vmem [shape: f32[8,256], index: 0, kind: input, shape index: {}]
  %s1 = inlined_call_operand.vmem [shape: f32[1,256], index: 1, kind: input, shape index: {}]
  %s2 = inlined_call_operand.vmem [shape: f32[128,8], index: 2, kind: input, shape index: {}]
  %s3 = inlined_call_operand.hbm [shape: f32[128,256], index: 3, kind: output, shape index: {}]
  %s4 = sld [smem:[#allocation0]]
  $region45: #{tpu_custom_call.1} parent=0
    _
  %s6 = ssub.s32 1, %s4
  %s7 = scalar_select 0, %s6, %s4
  $region1: #{tpu_custom_call.1} parent=0
    #allocation2 [shape = 'u8[65536]{0}', space=vmem, size = 0x10000, scoped, tag = 'output window, operand 0']
    #allocation3 [shape = 's32[2]{0}', space=sflag, size = 0x8, scoped, tag = 'scoped memory for tpu_custom_call.1']
    %8 = vsyncpa [#allocation3], 0
    %s9 = scalar_lea.sflag [#allocation3], 1
    %10 = vsyncpa %s9, 0
    loop: start=0, step=1, limit=6
    $region2: #{tpu_custom_call.1} parent=1 // loop_pre_header
      _
    $region3: #{tpu_custom_call.1} parent=1 // loop_header
      %s12 = sphi 0, %s16
      %p13 = scmp.ge.s32.totalorder %s12, 6
      %s20 = sphi 0, %s20
      %s22 = sphi 0, %s20
      %s23 = sphi 0, %s22
      %s37 = sphi 0, %s23
      %s41 = sphi 0, %s41
      %s43 = sphi 0, %s41
      %s44 = sphi 0, %s43
      %s58 = sphi 0, %s44
      %s64 = sphi 0, %s66
      %s67 = sphi 0, %s64
      %s68 = sphi 0, %s67
      %s84 = sphi 0, %s68
      %s90 = sphi 0, %s92
      %s93 = sphi 0, %s90
      %s94 = sphi 0, %s93
      %s110 = sphi 0, %s94
    $region4: #{tpu_custom_call.1} parent=1 // loop_header_branch
      %15 = sbr.rel (%p13) target = $region8
    $region5: #{tpu_custom_call.1} parent=1 // loop_body
      %s17 = ssub.s32 %s12, 1
      %s18 = ssub.s32 %s12, 2
      %s19 = sadd.s32 %s12, 1
      %s21 = sadd.s32 %s20, 1
      %p24 = scmp.eq.s32.totalorder %s12, 3
      %p25 = scmp.ne.s32.totalorder %s20, %s22
      %p26 = scmp.eq.s32.totalorder %s12, 0
      %p27 = por %p25, %p26
      %p28 = scmp.ne.s32.totalorder %s20, %s22
      %p29 = scmp.eq.s32.totalorder %s17, 3
      %p30 = por %p28, %p29
      %p31 = scmp.ne.s32.totalorder %s22, %s23
      %p32 = scmp.eq.s32.totalorder %s17, 0
      %p33 = por %p31, %p32
      %p34 = scmp.ne.s32.totalorder %s22, %s23
      %p35 = scmp.eq.s32.totalorder %s18, 3
      %p36 = por %p34, %p35
      %p38 = scmp.ne.s32.totalorder %s23, %s37
      %p39 = scmp.eq.s32.totalorder %s18, 0
      %p40 = por %p38, %p39
      %s42 = sadd.s32 %s41, 1
      %p45 = scmp.eq.s32.totalorder %s12, 3
      %p46 = scmp.ne.s32.totalorder %s41, %s43
      %p47 = scmp.eq.s32.totalorder %s12, 0
      %p48 = por %p46, %p47
      %p49 = scmp.ne.s32.totalorder %s41, %s43
      %p50 = scmp.eq.s32.totalorder %s17, 3
      %p51 = por %p49, %p50
      %p52 = scmp.ne.s32.totalorder %s43, %s44
      %p53 = scmp.eq.s32.totalorder %s17, 0
      %p54 = por %p52, %p53
      %p55 = scmp.ne.s32.totalorder %s43, %s44
      %p56 = scmp.eq.s32.totalorder %s18, 3
      %p57 = por %p55, %p56
      %p59 = scmp.ne.s32.totalorder %s44, %s58
      %p60 = scmp.eq.s32.totalorder %s18, 0
      %p61 = por %p59, %p60
      %s62 = ssub.s32 %s12, %s19
      %p63 = scmp.eq.s32.totalorder %s62, 0
      %s65 = sadd.s32 %s64, 1
      %s66 = scalar_select %p63, %s64, %s65
      %p69 = pneg %p63
      %p70 = scmp.eq.s32.totalorder %s12, 3
      %p71 = por %p69, %p70
      %p72 = scmp.ne.s32.totalorder %s64, %s67
      %p73 = scmp.eq.s32.totalorder %s12, 0
      %p74 = por %p72, %p73
      %p75 = scmp.ne.s32.totalorder %s64, %s67
      %p76 = scmp.eq.s32.totalorder %s17, 3
      %p77 = por %p75, %p76
      %p78 = scmp.ne.s32.totalorder %s67, %s68
      %p79 = scmp.eq.s32.totalorder %s17, 0
      %p80 = por %p78, %p79
      %p81 = scmp.ne.s32.totalorder %s67, %s68
      %p82 = scmp.eq.s32.totalorder %s18, 3
      %p83 = por %p81, %p82
      %p85 = scmp.ne.s32.totalorder %s68, %s84
      %p86 = scmp.eq.s32.totalorder %s18, 0
      %p87 = por %p85, %p86
      %s88 = ssub.s32 %s12, %s19
      %p89 = scmp.eq.s32.totalorder %s88, 0
      %s91 = sadd.s32 %s90, 1
      %s92 = scalar_select %p89, %s90, %s91
      %p95 = pneg %p89
      %p96 = scmp.eq.s32.totalorder %s12, 3
      %p97 = por %p95, %p96
      %p98 = scmp.ne.s32.totalorder %s90, %s93
      %p99 = scmp.eq.s32.totalorder %s12, 0
      %p100 = por %p98, %p99
      %p101 = scmp.ne.s32.totalorder %s90, %s93
      %p102 = scmp.eq.s32.totalorder %s17, 3
      %p103 = por %p101, %p102
      %p104 = scmp.ne.s32.totalorder %s93, %s94
      %p105 = scmp.eq.s32.totalorder %s17, 0
      %p106 = por %p104, %p105
      %p107 = scmp.ne.s32.totalorder %s93, %s94
      %p108 = scmp.eq.s32.totalorder %s18, 3
      %p109 = por %p107, %p108
      %p111 = scmp.ne.s32.totalorder %s94, %s110
      %p112 = scmp.eq.s32.totalorder %s18, 0
      %p113 = por %p111, %p112
      %p114 = scmp.le.s32.totalorder 1, %s12
      %p115 = scmp.lt.s32.totalorder %s12, 5
      %p116 = pnand %p114, %p115
      %p117 = pneg %p116
      // Predicated region
      $region9: #{tpu_custom_call.1} parent=5 // pred_check
        _
      $region10: #{tpu_custom_call.1} parent=5 // pred_check_branch
        %119 = sbr.rel (%p116) target = $region12
      $region11: #{tpu_custom_call.1} parent=5 // pred_region
        %s120 = ssub.s32 %s12, 1
        // Predicated region
        $region13: #{tpu_custom_call.1} parent=11 // pred_check
          %p121 = pneg %p33
        $region14: #{tpu_custom_call.1} parent=11 // pred_check_branch
          %123 = sbr.rel (%p121) target = $region16
        $region15: #{tpu_custom_call.1} parent=11 // pred_region
          _
        $region16: #{tpu_custom_call.1} parent=11 // pred_fallthru
          _
        // Predicated region
        $region17: #{tpu_custom_call.1} parent=11 // pred_check
          %p124 = pneg %p54
        $region18: #{tpu_custom_call.1} parent=11 // pred_check_branch
          %126 = sbr.rel (%p124) target = $region20
        $region19: #{tpu_custom_call.1} parent=11 // pred_region
          _
        $region20: #{tpu_custom_call.1} parent=11 // pred_fallthru
          _
      $region12: #{tpu_custom_call.1} parent=5 // pred_fallthru
        _
      %p127 = scmp.lt.s32.totalorder %s12, 4
      // Predicated region
      $region21: #{tpu_custom_call.1} parent=5 // pred_check
        %p128 = pneg %p127
      $region22: #{tpu_custom_call.1} parent=5 // pred_check_branch
        %130 = sbr.rel (%p128) target = $region24
      $region23: #{tpu_custom_call.1} parent=5 // pred_region
        // Predicated region
        $region25: #{tpu_custom_call.1} parent=23 // pred_check
          %p131 = pneg %p74
        $region26: #{tpu_custom_call.1} parent=23 // pred_check_branch
          %133 = sbr.rel (%p131) target = $region28
        $region27: #{tpu_custom_call.1} parent=23 // pred_region
          %s134 = smul.u32 4, %s12
          %p135 = scmp.lt.s32.totalorder %s134, 15
          %s136 = scalar_select %p135, %s134, 15
          %s137 = smul.addr %s136, 8
          %s138 = scalar_lea.vmem %s2, %s137
          %s139 = smul.u32 4, %s12
        $region28: #{tpu_custom_call.1} parent=23 // pred_fallthru
          _
      $region24: #{tpu_custom_call.1} parent=5 // pred_fallthru
        _
      %p140 = scmp.le.s32.totalorder 1, %s12
      %p141 = scmp.lt.s32.totalorder %s12, 5
      %p142 = pnand %p140, %p141
      %p143 = pneg %p142
      // Predicated region
      $region29: #{tpu_custom_call.1} parent=5 // pred_check
        _
      $region30: #{tpu_custom_call.1} parent=5 // pred_check_branch
        %145 = sbr.rel (%p142) target = $region32
      $region31: #{tpu_custom_call.1} parent=5 // pred_region
        %s146 = ssub.s32 %s12, 1
        %p147 = pneg %p33
        %p148 = pneg %p30
        %p149 = pneg %p54
        %p150 = pneg %p51
        %s151 = smul.u32 4, %s17
        %p152 = scmp.lt.s32.totalorder %s151, 15
        %s153 = scalar_select %p152, %s151, 15
        %s154 = smul.addr %s153, 8
        %s155 = scalar_lea.vmem %s2, %s154
        %p156 = pneg %p80
        %p157 = pneg %p77
        %p158 = pneg %p106
        %p159 = pneg %p103
        %s160 = sand.u32 %s93, 1
        %s161 = scalar_lea.sflag [#allocation3], %s160
        %s162 = sand.u32 %s93, 1
        %s163 = smul.addr %s162, 64
        %s164 = scalar_lea.vmem [#allocation2], %s163
        %s165 = smul.u32 4, %s17
        %p166 = scmp.lt.s32.totalorder %s165, 15
        %s167 = scalar_select %p166, %s165, 15
        %s168 = smul.addr %s167, 8
        %s169 = scalar_lea.vmem %s2, %s168
        %s170 = smul.u32 4, %s17
        %s171 = smul.u32 4, %s17
        %v172 = vld [vmem:[%s169] sm:$0xff]
        %v173 = vld [vmem:[%s169 + $0x8] sm:$0xff]
        %v174 = vld [vmem:[%s169 + $0x10] sm:$0xff]
        %v175 = vld [vmem:[%s169 + $0x18] sm:$0xff]
        %v176 = vld [vmem:[%s0] sm:$0xff]
        %v177 = vld [vmem:[%s0 + $0x8] sm:$0xff]
        %v178 = vld [vmem:[%s1] sm:$0x3]
        %v180 = vlaneseq
        %v181 = vshrl.u32 %v180, 7
        %v182 = vsub.s32 0, %v181
        %v183 = vrot.slane %v178, %v182
        %v184 = vlaneseq
        %v185 = vshrl.u32 %v184, 7
        %v186 = vsub.s32 1, %v185
        %v187 = vrot.slane %v178, %v186
        %vm190 = vcmask 64512
        %v192 = vsel %vm190, %v172, 0
        %v195 = vsel %vm190, %v173, 0
        %v198 = vsel %vm190, %v174, 0
        %v201 = vsel %vm190, %v175, 0
        %v203 = vand.u32 %v177, 4294901760
        %204 = vmatprep.subr.mxu0 %v203
        %v205 = vand.u32 %v176, 4294901760
        %206 = vmatpush1.msra.mxu0 %v205
        %207 = vmatprep.subr.mxu0 0.0
        %208 = vmatpush1.msra.mxu0 0.0
        %209 = vmatprep.subr.mxu0 0.0
        %210 = vmatpush1.msra.mxu0 0.0
        %211 = vmatprep.subr.mxu0 0.0
        %212 = vmatpush1.msra.mxu0 0.0
        %213 = vmatprep.subr.mxu0 0.0
        %214 = vmatpush1.msra.mxu0 0.0
        %215 = vmatprep.subr.mxu0 0.0
        %216 = vmatpush1.msra.mxu0 0.0
        %217 = vmatprep.subr.mxu0 0.0
        %218 = vmatpush1.msra.mxu0 0.0
        %219 = vmatprep.subr.mxu0 0.0
        %220 = vmatpush1.msra.mxu0 0.0
        %221 = vmatprep.subr.mxu0 0.0
        %222 = vmatpush1.msra.mxu0 0.0
        %223 = vmatprep.subr.mxu0 0.0
        %224 = vmatpush1.msra.mxu0 0.0
        %225 = vmatprep.subr.mxu0 0.0
        %226 = vmatpush1.msra.mxu0 0.0
        %227 = vmatprep.subr.mxu0 0.0
        %228 = vmatpush1.msra.mxu0 0.0
        %229 = vmatprep.subr.mxu0 0.0
        %230 = vmatpush1.msra.mxu0 0.0
        %231 = vmatprep.subr.mxu0 0.0
        %232 = vmatpush1.msra.mxu0 0.0
        %233 = vmatprep.subr.mxu0 0.0
        %234 = vmatpush1.msra.mxu0 0.0
        %235 = vmatprep.subr.mxu0 0.0
        %236 = vmatpush1.msra.mxu0 0.0
        %237 = vmatprep.subr.mxu0 0.0
        %238 = vmatpush1.msra.mxu0 0.0
        %239 = vmatprep.subr.mxu0 0.0
        %240 = vmatpush1.msra.mxu0 0.0
        %241 = vmatprep.subr.mxu0 0.0
        %242 = vmatpush1.msra.mxu0 0.0
        %243 = vmatprep.subr.mxu0 0.0
        %244 = vmatpush1.msra.mxu0 0.0
        %245 = vmatprep.subr.mxu0 0.0
        %246 = vmatpush1.msra.mxu0 0.0
        %247 = vmatprep.subr.mxu0 0.0
        %248 = vmatpush1.msra.mxu0 0.0
        %249 = vmatprep.subr.mxu0 0.0
        %250 = vmatpush1.msra.mxu0 0.0
        %251 = vmatprep.subr.mxu0 0.0
        %252 = vmatpush1.msra.mxu0 0.0
        %253 = vmatprep.subr.mxu0 0.0
        %254 = vmatpush1.msra.mxu0 0.0
        %255 = vmatprep.subr.mxu0 0.0
        %256 = vmatpush1.msra.mxu0 0.0
        %257 = vmatprep.subr.mxu0 0.0
        %258 = vmatpush1.msra.mxu0 0.0
        %259 = vmatprep.subr.mxu0 0.0
        %260 = vmatpush1.msra.mxu0 0.0
        %261 = vmatprep.subr.mxu0 0.0
        %262 = vmatpush1.msra.mxu0 0.0
        %263 = vmatprep.subr.mxu0 0.0
        %264 = vmatpush1.msra.mxu0 0.0
        %265 = vmatprep.subr.mxu0 0.0
        %266 = vmatpush1.msra.mxu0 0.0
        %267 = vmatprep.subr.mxu0 0.0
        %268 = vmatpush1.msra.mxu0 0.0
        %269 = vmatprep.mubr.f32.mxu0 0.0
        %v270 = vand.u32 %v192, 4294901760
        %v271 = vsub.f32 %v192, %v270
        %v272 = vand.u32 %v271, 4294901760
        %v273 = vsub.f32 %v271, %v272
        %v274 = vand.u32 %v273, 4294901760
        %275 = vmatmul.mubr.f32.gmra.mrb[0].mxu0 %v274
        %v276 = vpop.f32.mrb[0].mxu0
        %v277 = vadd.f32 %v183, %v276
        %v278 = vpop.f32.mrb[0].mxu0
        %v279 = vadd.f32 %v187, %v278
        %280 = vmatprep.mubr.f32.mxu0 0.0
        %v281 = vand.u32 %v195, 4294901760
        %v282 = vsub.f32 %v195, %v281
        %v283 = vand.u32 %v282, 4294901760
        %v284 = vsub.f32 %v282, %v283
        %v285 = vand.u32 %v284, 4294901760
        %286 = vmatmul.mubr.f32.gmra.mrb[0].mxu0 %v285
        %v287 = vpop.f32.mrb[0].mxu0
        %v288 = vadd.f32 %v183, %v287
        %v289 = vpop.f32.mrb[0].mxu0
        %v290 = vadd.f32 %v187, %v289
        %291 = vmatprep.mubr.f32.mxu0 0.0
        %v292 = vand.u32 %v198, 4294901760
        %v293 = vsub.f32 %v198, %v292
        %v294 = vand.u32 %v293, 4294901760
        %v295 = vsub.f32 %v293, %v294
        %v296 = vand.u32 %v295, 4294901760
        %297 = vmatmul.mubr.f32.gmra.mrb[0].mxu0 %v296
        %v298 = vpop.f32.mrb[0].mxu0
        %v299 = vadd.f32 %v183, %v298
        %v300 = vpop.f32.mrb[0].mxu0
        %v301 = vadd.f32 %v187, %v300
        %302 = vmatprep.mubr.f32.mxu0 0.0
        %v303 = vand.u32 %v201, 4294901760
        %v304 = vsub.f32 %v201, %v303
        %v305 = vand.u32 %v304, 4294901760
        %v306 = vsub.f32 %v304, %v305
        %v307 = vand.u32 %v306, 4294901760
        %308 = vmatmul.mubr.f32.gmra.mrb[0].mxu0 %v307
        %v309 = vpop.f32.mrb[0].mxu0
        %v310 = vadd.f32 %v183, %v309
        %v311 = vpop.f32.mrb[0].mxu0
        %v312 = vadd.f32 %v187, %v311
        %313 = vdwg.mxu0
        %v314 = vand.u32 %v177, 4294901760
        %v315 = vsub.f32 %v177, %v314
        %v316 = vand.u32 %v315, 4294901760
        %v317 = vsub.f32 %v315, %v316
        %v318 = vand.u32 %v317, 4294901760
        %319 = vmatprep.subr.mxu0 %v318
        %v320 = vand.u32 %v176, 4294901760
        %v321 = vsub.f32 %v176, %v320
        %v322 = vand.u32 %v321, 4294901760
        %v323 = vsub.f32 %v321, %v322
        %v324 = vand.u32 %v323, 4294901760
        %325 = vmatpush1.msra.mxu0 %v324
        %326 = vmatprep.subr.mxu0 0.0
        %327 = vmatpush1.msra.mxu0 0.0
        %328 = vmatprep.subr.mxu0 0.0
        %329 = vmatpush1.msra.mxu0 0.0
        %330 = vmatprep.subr.mxu0 0.0
        %331 = vmatpush1.msra.mxu0 0.0
        %332 = vmatprep.subr.mxu0 0.0
        %333 = vmatpush1.msra.mxu0 0.0
        %334 = vmatprep.subr.mxu0 0.0
        %335 = vmatpush1.msra.mxu0 0.0
        %336 = vmatprep.subr.mxu0 0.0
        %337 = vmatpush1.msra.mxu0 0.0
        %338 = vmatprep.subr.mxu0 0.0
        %339 = vmatpush1.msra.mxu0 0.0
        %340 = vmatprep.subr.mxu0 0.0
        %341 = vmatpush1.msra.mxu0 0.0
        %342 = vmatprep.subr.mxu0 0.0
        %343 = vmatpush1.msra.mxu0 0.0
        %344 = vmatprep.subr.mxu0 0.0
        %345 = vmatpush1.msra.mxu0 0.0
        %346 = vmatprep.subr.mxu0 0.0
        %347 = vmatpush1.msra.mxu0 0.0
        %348 = vmatprep.subr.mxu0 0.0
        %349 = vmatpush1.msra.mxu0 0.0
        %350 = vmatprep.subr.mxu0 0.0
        %351 = vmatpush1.msra.mxu0 0.0
        %352 = vmatprep.subr.mxu0 0.0
        %353 = vmatpush1.msra.mxu0 0.0
        %354 = vmatprep.subr.mxu0 0.0
        %355 = vmatpush1.msra.mxu0 0.0
        %356 = vmatprep.subr.mxu0 0.0
        %357 = vmatpush1.msra.mxu0 0.0
        %358 = vmatprep.subr.mxu0 0.0
        %359 = vmatpush1.msra.mxu0 0.0
        %360 = vmatprep.subr.mxu0 0.0
        %361 = vmatpush1.msra.mxu0 0.0
        %362 = vmatprep.subr.mxu0 0.0
        %363 = vmatpush1.msra.mxu0 0.0
        %364 = vmatprep.subr.mxu0 0.0
        %365 = vmatpush1.msra.mxu0 0.0
        %366 = vmatprep.subr.mxu0 0.0
        %367 = vmatpush1.msra.mxu0 0.0
        %368 = vmatprep.subr.mxu0 0.0
        %369 = vmatpush1.msra.mxu0 0.0
        %370 = vmatprep.subr.mxu0 0.0
        %371 = vmatpush1.msra.mxu0 0.0
        %372 = vmatprep.subr.mxu0 0.0
        %373 = vmatpush1.msra.mxu0 0.0
        %374 = vmatprep.subr.mxu0 0.0
        %375 = vmatpush1.msra.mxu0 0.0
        %376 = vmatprep.subr.mxu0 0.0
        %377 = vmatpush1.msra.mxu0 0.0
        %378 = vmatprep.subr.mxu0 0.0
        %379 = vmatpush1.msra.mxu0 0.0
        %380 = vmatprep.subr.mxu0 0.0
        %381 = vmatpush1.msra.mxu0 0.0
        %382 = vmatprep.subr.mxu0 0.0
        %383 = vmatpush1.msra.mxu0 0.0
        %384 = vmatprep.subr.mxu0 0.0
        %385 = vmatpush1.msra.mxu0 0.0
        %386 = vmatprep.subr.mxu0 0.0
        %387 = vmatpush1.msra.mxu0 0.0
        %388 = vmatprep.mubr.f32.mxu0 0.0
        %v389 = vand.u32 %v192, 4294901760
        %390 = vmatmul.mubr.f32.gmra.mrb[0].mxu0 %v389
        %v391 = vpop.f32.mrb[0].mxu0
        %v392 = vadd.f32 %v277, %v391
        %v393 = vpop.f32.mrb[0].mxu0
        %v394 = vadd.f32 %v279, %v393
        %395 = vmatprep.mubr.f32.mxu0 0.0
        %v396 = vand.u32 %v195, 4294901760
        %397 = vmatmul.mubr.f32.gmra.mrb[0].mxu0 %v396
        %v398 = vpop.f32.mrb[0].mxu0
        %v399 = vadd.f32 %v288, %v398
        %v400 = vpop.f32.mrb[0].mxu0
        %v401 = vadd.f32 %v290, %v400
        %402 = vmatprep.mubr.f32.mxu0 0.0
        %v403 = vand.u32 %v198, 4294901760
        %404 = vmatmul.mubr.f32.gmra.mrb[0].mxu0 %v403
        %v405 = vpop.f32.mrb[0].mxu0
        %v406 = vadd.f32 %v299, %v405
        %v407 = vpop.f32.mrb[0].mxu0
        %v408 = vadd.f32 %v301, %v407
        %409 = vmatprep.mubr.f32.mxu0 0.0
        %v410 = vand.u32 %v201, 4294901760
        %411 = vmatmul.mubr.f32.gmra.mrb[0].mxu0 %v410
        %v412 = vpop.f32.mrb[0].mxu0
        %v413 = vadd.f32 %v310, %v412
        %v414 = vpop.f32.mrb[0].mxu0
        %v415 = vadd.f32 %v312, %v414
        %416 = vdwg.mxu0
        %v417 = vand.u32 %v177, 4294901760
        %v418 = vsub.f32 %v177, %v417
        %419 = vmatprep.subr.mxu0 %v418
        %v420 = vand.u32 %v176, 4294901760
        %v421 = vsub.f32 %v176, %v420
        %422 = vmatpush1.msra.mxu0 %v421
        %423 = vmatprep.subr.mxu0 0.0
        %424 = vmatpush1.msra.mxu0 0.0
        %425 = vmatprep.subr.mxu0 0.0
        %426 = vmatpush1.msra.mxu0 0.0
        %427 = vmatprep.subr.mxu0 0.0
        %428 = vmatpush1.msra.mxu0 0.0
        %429 = vmatprep.subr.mxu0 0.0
        %430 = vmatpush1.msra.mxu0 0.0
        %431 = vmatprep.subr.mxu0 0.0
        %432 = vmatpush1.msra.mxu0 0.0
        %433 = vmatprep.subr.mxu0 0.0
        %434 = vmatpush1.msra.mxu0 0.0
        %435 = vmatprep.subr.mxu0 0.0
        %436 = vmatpush1.msra.mxu0 0.0
        %437 = vmatprep.subr.mxu0 0.0
        %438 = vmatpush1.msra.mxu0 0.0
        %439 = vmatprep.subr.mxu0 0.0
        %440 = vmatpush1.msra.mxu0 0.0
        %441 = vmatprep.subr.mxu0 0.0
        %442 = vmatpush1.msra.mxu0 0.0
        %443 = vmatprep.subr.mxu0 0.0
        %444 = vmatpush1.msra.mxu0 0.0
        %445 = vmatprep.subr.mxu0 0.0
        %446 = vmatpush1.msra.mxu0 0.0
        %447 = vmatprep.subr.mxu0 0.0
        %448 = vmatpush1.msra.mxu0 0.0
        %449 = vmatprep.subr.mxu0 0.0
        %450 = vmatpush1.msra.mxu0 0.0
        %451 = vmatprep.subr.mxu0 0.0
        %452 = vmatpush1.msra.mxu0 0.0
        %453 = vmatprep.subr.mxu0 0.0
        %454 = vmatpush1.msra.mxu0 0.0
        %455 = vmatprep.subr.mxu0 0.0
        %456 = vmatpush1.msra.mxu0 0.0
        %457 = vmatprep.subr.mxu0 0.0
        %458 = vmatpush1.msra.mxu0 0.0
        %459 = vmatprep.subr.mxu0 0.0
        %460 = vmatpush1.msra.mxu0 0.0
        %461 = vmatprep.subr.mxu0 0.0
        %462 = vmatpush1.msra.mxu0 0.0
        %463 = vmatprep.subr.mxu0 0.0
        %464 = vmatpush1.msra.mxu0 0.0
        %465 = vmatprep.subr.mxu0 0.0
        %466 = vmatpush1.msra.mxu0 0.0
        %467 = vmatprep.subr.mxu0 0.0
        %468 = vmatpush1.msra.mxu0 0.0
        %469 = vmatprep.subr.mxu0 0.0
        %470 = vmatpush1.msra.mxu0 0.0
        %471 = vmatprep.subr.mxu0 0.0
        %472 = vmatpush1.msra.mxu0 0.0
        %473 = vmatprep.subr.mxu0 0.0
        %474 = vmatpush1.msra.mxu0 0.0
        %475 = vmatprep.subr.mxu0 0.0
        %476 = vmatpush1.msra.mxu0 0.0
        %477 = vmatprep.subr.mxu0 0.0
        %478 = vmatpush1.msra.mxu0 0.0
        %479 = vmatprep.subr.mxu0 0.0
        %480 = vmatpush1.msra.mxu0 0.0
        %481 = vmatprep.subr.mxu0 0.0
        %482 = vmatpush1.msra.mxu0 0.0
        %483 = vmatprep.subr.mxu0 0.0
        %484 = vmatpush1.msra.mxu0 0.0
        %485 = vmatprep.mubr.f32.mxu0 0.0
        %v486 = vand.u32 %v192, 4294901760
        %v487 = vsub.f32 %v192, %v486
        %488 = vmatmul.mubr.f32.gmra.mrb[0].mxu0 %v487
        %v489 = vpop.f32.mrb[0].mxu0
        %v490 = vadd.f32 %v392, %v489
        %v491 = vpop.f32.mrb[0].mxu0
        %v492 = vadd.f32 %v394, %v491
        %493 = vmatprep.mubr.f32.mxu0 0.0
        %v494 = vand.u32 %v195, 4294901760
        %v495 = vsub.f32 %v195, %v494
        %496 = vmatmul.mubr.f32.gmra.mrb[0].mxu0 %v495
        %v497 = vpop.f32.mrb[0].mxu0
        %v498 = vadd.f32 %v399, %v497
        %v499 = vpop.f32.mrb[0].mxu0
        %v500 = vadd.f32 %v401, %v499
        %501 = vmatprep.mubr.f32.mxu0 0.0
        %v502 = vand.u32 %v198, 4294901760
        %v503 = vsub.f32 %v198, %v502
        %504 = vmatmul.mubr.f32.gmra.mrb[0].mxu0 %v503
        %v505 = vpop.f32.mrb[0].mxu0
        %v506 = vadd.f32 %v406, %v505
        %v507 = vpop.f32.mrb[0].mxu0
        %v508 = vadd.f32 %v408, %v507
        %509 = vmatprep.mubr.f32.mxu0 0.0
        %v510 = vand.u32 %v201, 4294901760
        %v511 = vsub.f32 %v201, %v510
        %512 = vmatmul.mubr.f32.gmra.mrb[0].mxu0 %v511
        %v513 = vpop.f32.mrb[0].mxu0
        %v514 = vadd.f32 %v413, %v513
        %v515 = vpop.f32.mrb[0].mxu0
        %v516 = vadd.f32 %v415, %v515
        %517 = vdwg.mxu0
        %v518 = vand.u32 %v177, 4294901760
        %519 = vmatprep.subr.mxu0 %v518
        %v520 = vand.u32 %v176, 4294901760
        %521 = vmatpush1.msra.mxu0 %v520
        %522 = vmatprep.subr.mxu0 0.0
        %523 = vmatpush1.msra.mxu0 0.0
        %524 = vmatprep.subr.mxu0 0.0
        %525 = vmatpush1.msra.mxu0 0.0
        %526 = vmatprep.subr.mxu0 0.0
        %527 = vmatpush1.msra.mxu0 0.0
        %528 = vmatprep.subr.mxu0 0.0
        %529 = vmatpush1.msra.mxu0 0.0
        %530 = vmatprep.subr.mxu0 0.0
        %531 = vmatpush1.msra.mxu0 0.0
        %532 = vmatprep.subr.mxu0 0.0
        %533 = vmatpush1.msra.mxu0 0.0
        %534 = vmatprep.subr.mxu0 0.0
        %535 = vmatpush1.msra.mxu0 0.0
        %536 = vmatprep.subr.mxu0 0.0
        %537 = vmatpush1.msra.mxu0 0.0
        %538 = vmatprep.subr.mxu0 0.0
        %539 = vmatpush1.msra.mxu0 0.0
        %540 = vmatprep.subr.mxu0 0.0
        %541 = vmatpush1.msra.mxu0 0.0
        %542 = vmatprep.subr.mxu0 0.0
        %543 = vmatpush1.msra.mxu0 0.0
        %544 = vmatprep.subr.mxu0 0.0
        %545 = vmatpush1.msra.mxu0 0.0
        %546 = vmatprep.subr.mxu0 0.0
        %547 = vmatpush1.msra.mxu0 0.0
        %548 = vmatprep.subr.mxu0 0.0
        %549 = vmatpush1.msra.mxu0 0.0
        %550 = vmatprep.subr.mxu0 0.0
        %551 = vmatpush1.msra.mxu0 0.0
        %552 = vmatprep.subr.mxu0 0.0
        %553 = vmatpush1.msra.mxu0 0.0
        %554 = vmatprep.subr.mxu0 0.0
        %555 = vmatpush1.msra.mxu0 0.0
        %556 = vmatprep.subr.mxu0 0.0
        %557 = vmatpush1.msra.mxu0 0.0
        %558 = vmatprep.subr.mxu0 0.0
        %559 = vmatpush1.msra.mxu0 0.0
        %560 = vmatprep.subr.mxu0 0.0
        %561 = vmatpush1.msra.mxu0 0.0
        %562 = vmatprep.subr.mxu0 0.0
        %563 = vmatpush1.msra.mxu0 0.0
        %564 = vmatprep.subr.mxu0 0.0
        %565 = vmatpush1.msra.mxu0 0.0
        %566 = vmatprep.subr.mxu0 0.0
        %567 = vmatpush1.msra.mxu0 0.0
        %568 = vmatprep.subr.mxu0 0.0
        %569 = vmatpush1.msra.mxu0 0.0
        %570 = vmatprep.subr.mxu0 0.0
        %571 = vmatpush1.msra.mxu0 0.0
        %572 = vmatprep.subr.mxu0 0.0
        %573 = vmatpush1.msra.mxu0 0.0
        %574 = vmatprep.subr.mxu0 0.0
        %575 = vmatpush1.msra.mxu0 0.0
        %576 = vmatprep.subr.mxu0 0.0
        %577 = vmatpush1.msra.mxu0 0.0
        %578 = vmatprep.subr.mxu0 0.0
        %579 = vmatpush1.msra.mxu0 0.0
        %580 = vmatprep.subr.mxu0 0.0
        %581 = vmatpush1.msra.mxu0 0.0
        %582 = vmatprep.subr.mxu0 0.0
        %583 = vmatpush1.msra.mxu0 0.0
        %584 = vmatprep.mubr.f32.mxu0 0.0
        %v585 = vand.u32 %v192, 4294901760
        %v586 = vsub.f32 %v192, %v585
        %v587 = vand.u32 %v586, 4294901760
        %588 = vmatmul.mubr.f32.gmra.mrb[0].mxu0 %v587
        %v589 = vpop.f32.mrb[0].mxu0
        %v590 = vadd.f32 %v490, %v589
        %v591 = vpop.f32.mrb[0].mxu0
        %v592 = vadd.f32 %v492, %v591
        %593 = vmatprep.mubr.f32.mxu0 0.0
        %v594 = vand.u32 %v195, 4294901760
        %v595 = vsub.f32 %v195, %v594
        %v596 = vand.u32 %v595, 4294901760
        %597 = vmatmul.mubr.f32.gmra.mrb[0].mxu0 %v596
        %v598 = vpop.f32.mrb[0].mxu0
        %v599 = vadd.f32 %v498, %v598
        %v600 = vpop.f32.mrb[0].mxu0
        %v601 = vadd.f32 %v500, %v600
        %602 = vmatprep.mubr.f32.mxu0 0.0
        %v603 = vand.u32 %v198, 4294901760
        %v604 = vsub.f32 %v198, %v603
        %v605 = vand.u32 %v604, 4294901760
        %606 = vmatmul.mubr.f32.gmra.mrb[0].mxu0 %v605
        %v607 = vpop.f32.mrb[0].mxu0
        %v608 = vadd.f32 %v506, %v607
        %v609 = vpop.f32.mrb[0].mxu0
        %v610 = vadd.f32 %v508, %v609
        %611 = vmatprep.mubr.f32.mxu0 0.0
        %v612 = vand.u32 %v201, 4294901760
        %v613 = vsub.f32 %v201, %v612
        %v614 = vand.u32 %v613, 4294901760
        %615 = vmatmul.mubr.f32.gmra.mrb[0].mxu0 %v614
        %v616 = vpop.f32.mrb[0].mxu0
        %v617 = vadd.f32 %v514, %v616
        %v618 = vpop.f32.mrb[0].mxu0
        %v619 = vadd.f32 %v516, %v618
        %620 = vdwg.mxu0
        %v621 = vand.u32 %v177, 4294901760
        %v622 = vsub.f32 %v177, %v621
        %v623 = vand.u32 %v622, 4294901760
        %624 = vmatprep.subr.mxu0 %v623
        %v625 = vand.u32 %v176, 4294901760
        %v626 = vsub.f32 %v176, %v625
        %v627 = vand.u32 %v626, 4294901760
        %628 = vmatpush1.msra.mxu0 %v627
        %629 = vmatprep.subr.mxu0 0.0
        %630 = vmatpush1.msra.mxu0 0.0
        %631 = vmatprep.subr.mxu0 0.0
        %632 = vmatpush1.msra.mxu0 0.0
        %633 = vmatprep.subr.mxu0 0.0
        %634 = vmatpush1.msra.mxu0 0.0
        %635 = vmatprep.subr.mxu0 0.0
        %636 = vmatpush1.msra.mxu0 0.0
        %637 = vmatprep.subr.mxu0 0.0
        %638 = vmatpush1.msra.mxu0 0.0
        %639 = vmatprep.subr.mxu0 0.0
        %640 = vmatpush1.msra.mxu0 0.0
        %641 = vmatprep.subr.mxu0 0.0
        %642 = vmatpush1.msra.mxu0 0.0
        %643 = vmatprep.subr.mxu0 0.0
        %644 = vmatpush1.msra.mxu0 0.0
        %645 = vmatprep.subr.mxu0 0.0
        %646 = vmatpush1.msra.mxu0 0.0
        %647 = vmatprep.subr.mxu0 0.0
        %648 = vmatpush1.msra.mxu0 0.0
        %649 = vmatprep.subr.mxu0 0.0
        %650 = vmatpush1.msra.mxu0 0.0
        %651 = vmatprep.subr.mxu0 0.0
        %652 = vmatpush1.msra.mxu0 0.0
        %653 = vmatprep.subr.mxu0 0.0
        %654 = vmatpush1.msra.mxu0 0.0
        %655 = vmatprep.subr.mxu0 0.0
        %656 = vmatpush1.msra.mxu0 0.0
        %657 = vmatprep.subr.mxu0 0.0
        %658 = vmatpush1.msra.mxu0 0.0
        %659 = vmatprep.subr.mxu0 0.0
        %660 = vmatpush1.msra.mxu0 0.0
        %661 = vmatprep.subr.mxu0 0.0
        %662 = vmatpush1.msra.mxu0 0.0
        %663 = vmatprep.subr.mxu0 0.0
        %664 = vmatpush1.msra.mxu0 0.0
        %665 = vmatprep.subr.mxu0 0.0
        %666 = vmatpush1.msra.mxu0 0.0
        %667 = vmatprep.subr.mxu0 0.0
        %668 = vmatpush1.msra.mxu0 0.0
        %669 = vmatprep.subr.mxu0 0.0
        %670 = vmatpush1.msra.mxu0 0.0
        %671 = vmatprep.subr.mxu0 0.0
        %672 = vmatpush1.msra.mxu0 0.0
        %673 = vmatprep.subr.mxu0 0.0
        %674 = vmatpush1.msra.mxu0 0.0
        %675 = vmatprep.subr.mxu0 0.0
        %676 = vmatpush1.msra.mxu0 0.0
        %677 = vmatprep.subr.mxu0 0.0
        %678 = vmatpush1.msra.mxu0 0.0
        %679 = vmatprep.subr.mxu0 0.0
        %680 = vmatpush1.msra.mxu0 0.0
        %681 = vmatprep.subr.mxu0 0.0
        %682 = vmatpush1.msra.mxu0 0.0
        %683 = vmatprep.subr.mxu0 0.0
        %684 = vmatpush1.msra.mxu0 0.0
        %685 = vmatprep.subr.mxu0 0.0
        %686 = vmatpush1.msra.mxu0 0.0
        %687 = vmatprep.subr.mxu0 0.0
        %688 = vmatpush1.msra.mxu0 0.0
        %689 = vmatprep.subr.mxu0 0.0
        %690 = vmatpush1.msra.mxu0 0.0
        %691 = vmatprep.mubr.f32.mxu0 0.0
        %v692 = vand.u32 %v192, 4294901760
        %693 = vmatmul.mubr.f32.gmra.mrb[0].mxu0 %v692
        %v694 = vpop.f32.mrb[0].mxu0
        %v695 = vadd.f32 %v590, %v694
        %v696 = vpop.f32.mrb[0].mxu0
        %v697 = vadd.f32 %v592, %v696
        %698 = vmatprep.mubr.f32.mxu0 0.0
        %v699 = vand.u32 %v195, 4294901760
        %700 = vmatmul.mubr.f32.gmra.mrb[0].mxu0 %v699
        %v701 = vpop.f32.mrb[0].mxu0
        %v702 = vadd.f32 %v599, %v701
        %v703 = vpop.f32.mrb[0].mxu0
        %v704 = vadd.f32 %v601, %v703
        %705 = vmatprep.mubr.f32.mxu0 0.0
        %v706 = vand.u32 %v198, 4294901760
        %707 = vmatmul.mubr.f32.gmra.mrb[0].mxu0 %v706
        %v708 = vpop.f32.mrb[0].mxu0
        %v709 = vadd.f32 %v608, %v708
        %v710 = vpop.f32.mrb[0].mxu0
        %v711 = vadd.f32 %v610, %v710
        %712 = vmatprep.mubr.f32.mxu0 0.0
        %v713 = vand.u32 %v201, 4294901760
        %714 = vmatmul.mubr.f32.gmra.mrb[0].mxu0 %v713
        %v715 = vpop.f32.mrb[0].mxu0
        %v716 = vadd.f32 %v617, %v715
        %v717 = vpop.f32.mrb[0].mxu0
        %v718 = vadd.f32 %v619, %v717
        %719 = vdwg.mxu0
        %v720 = vand.u32 %v177, 4294901760
        %721 = vmatprep.subr.mxu0 %v720
        %v722 = vand.u32 %v176, 4294901760
        %723 = vmatpush1.msra.mxu0 %v722
        %724 = vmatprep.subr.mxu0 0.0
        %725 = vmatpush1.msra.mxu0 0.0
        %726 = vmatprep.subr.mxu0 0.0
        %727 = vmatpush1.msra.mxu0 0.0
        %728 = vmatprep.subr.mxu0 0.0
        %729 = vmatpush1.msra.mxu0 0.0
        %730 = vmatprep.subr.mxu0 0.0
        %731 = vmatpush1.msra.mxu0 0.0
        %732 = vmatprep.subr.mxu0 0.0
        %733 = vmatpush1.msra.mxu0 0.0
        %734 = vmatprep.subr.mxu0 0.0
        %735 = vmatpush1.msra.mxu0 0.0
        %736 = vmatprep.subr.mxu0 0.0
        %737 = vmatpush1.msra.mxu0 0.0
        %738 = vmatprep.subr.mxu0 0.0
        %739 = vmatpush1.msra.mxu0 0.0
        %740 = vmatprep.subr.mxu0 0.0
        %741 = vmatpush1.msra.mxu0 0.0
        %742 = vmatprep.subr.mxu0 0.0
        %743 = vmatpush1.msra.mxu0 0.0
        %744 = vmatprep.subr.mxu0 0.0
        %745 = vmatpush1.msra.mxu0 0.0
        %746 = vmatprep.subr.mxu0 0.0
        %747 = vmatpush1.msra.mxu0 0.0
        %748 = vmatprep.subr.mxu0 0.0
        %749 = vmatpush1.msra.mxu0 0.0
        %750 = vmatprep.subr.mxu0 0.0
        %751 = vmatpush1.msra.mxu0 0.0
        %752 = vmatprep.subr.mxu0 0.0
        %753 = vmatpush1.msra.mxu0 0.0
        %754 = vmatprep.subr.mxu0 0.0
        %755 = vmatpush1.msra.mxu0 0.0
        %756 = vmatprep.subr.mxu0 0.0
        %757 = vmatpush1.msra.mxu0 0.0
        %758 = vmatprep.subr.mxu0 0.0
        %759 = vmatpush1.msra.mxu0 0.0
        %760 = vmatprep.subr.mxu0 0.0
        %761 = vmatpush1.msra.mxu0 0.0
        %762 = vmatprep.subr.mxu0 0.0
        %763 = vmatpush1.msra.mxu0 0.0
        %764 = vmatprep.subr.mxu0 0.0
        %765 = vmatpush1.msra.mxu0 0.0
        %766 = vmatprep.subr.mxu0 0.0
        %767 = vmatpush1.msra.mxu0 0.0
        %768 = vmatprep.subr.mxu0 0.0
        %769 = vmatpush1.msra.mxu0 0.0
        %770 = vmatprep.subr.mxu0 0.0
        %771 = vmatpush1.msra.mxu0 0.0
        %772 = vmatprep.subr.mxu0 0.0
        %773 = vmatpush1.msra.mxu0 0.0
        %774 = vmatprep.subr.mxu0 0.0
        %775 = vmatpush1.msra.mxu0 0.0
        %776 = vmatprep.subr.mxu0 0.0
        %777 = vmatpush1.msra.mxu0 0.0
        %778 = vmatprep.subr.mxu0 0.0
        %779 = vmatpush1.msra.mxu0 0.0
        %780 = vmatprep.subr.mxu0 0.0
        %781 = vmatpush1.msra.mxu0 0.0
        %782 = vmatprep.subr.mxu0 0.0
        %783 = vmatpush1.msra.mxu0 0.0
        %784 = vmatprep.subr.mxu0 0.0
        %785 = vmatpush1.msra.mxu0 0.0
        %786 = vmatprep.mubr.f32.mxu0 0.0
        %v787 = vand.u32 %v192, 4294901760
        %788 = vmatmul.mubr.f32.gmra.mrb[0].mxu0 %v787
        %v789 = vpop.f32.mrb[0].mxu0
        %v790 = vadd.f32 %v695, %v789
        %v791 = vpop.f32.mrb[0].mxu0
        %v792 = vadd.f32 %v697, %v791
        %793 = vmatprep.mubr.f32.mxu0 0.0
        %v794 = vand.u32 %v195, 4294901760
        %795 = vmatmul.mubr.f32.gmra.mrb[0].mxu0 %v794
        %v796 = vpop.f32.mrb[0].mxu0
        %v797 = vadd.f32 %v702, %v796
        %v798 = vpop.f32.mrb[0].mxu0
        %v799 = vadd.f32 %v704, %v798
        %800 = vmatprep.mubr.f32.mxu0 0.0
        %v801 = vand.u32 %v198, 4294901760
        %802 = vmatmul.mubr.f32.gmra.mrb[0].mxu0 %v801
        %v803 = vpop.f32.mrb[0].mxu0
        %v804 = vadd.f32 %v709, %v803
        %v805 = vpop.f32.mrb[0].mxu0
        %v806 = vadd.f32 %v711, %v805
        %807 = vmatprep.mubr.f32.mxu0 0.0
        %v808 = vand.u32 %v201, 4294901760
        %809 = vmatmul.mubr.f32.gmra.mrb[0].mxu0 %v808
        %v810 = vpop.f32.mrb[0].mxu0
        %v811 = vadd.f32 %v716, %v810
        %v812 = vpop.f32.mrb[0].mxu0
        %v813 = vadd.f32 %v718, %v812
        %814 = vdwg.mxu0
        %v815 = vand.u32 2147483647, %v790
        %vm816 = vcmp.le.f32.partialorder %v815, 0.7853982
        %vm817 = vcmp.lt.s32.totalorder %v790, 0
        %v818 = vand.u32 %v790, 2139095040
        %v819 = vshrl.u32 %v818, 23
        %v820 = vsub.s32 %v819, 127
        %v821 = vand.u32 2147483647, %v790
        %v822 = vand.u32 %v821, 8388607
        %v823 = vor.u32 %v822, 8388608
        %v824 = vsub.s32 0, %v823
        %v825 = vadd.s32 %v820, 1
        %vm826 = vcmp.gt.s32.totalorder %v825, 0
        %v827 = vsel %vm826, %v825, 0
        %v828 = vshrl.u32 %v827, 5
        %v829 = vand.u32 %v827, 31
        %v830 = vsub.s32 32, %v829
        %v831 = vshrl.u32 683565275, %v830
        %v832 = vshll.u32 683565275, %v829
        %v833 = vshrl.u32 2475754826, %v830
        %v834 = vor.u32 %v832, %v833
        %v835 = vshll.u32 2475754826, %v829
        %v836 = vshrl.u32 2131351028, %v830
        %v837 = vor.u32 %v835, %v836
        %v838 = vshll.u32 2131351028, %v829
        %v839 = vshrl.u32 2102212464, %v830
        %v840 = vor.u32 %v838, %v839
        %v841 = vshll.u32 2102212464, %v829
        %v842 = vshrl.u32 920167782, %v830
        %v843 = vor.u32 %v841, %v842
        %v844 = vshll.u32 920167782, %v829
        %v845 = vshrl.u32 1326507024, %v830
        %v846 = vor.u32 %v844, %v845
        %vm847 = vcmp.lt.s32.totalorder %v828, 1
        %vm848 = vcmp.lt.s32.totalorder %v828, 2
        %vm849 = vcmp.lt.s32.totalorder %v828, 3
        %vm850 = vcmp.lt.s32.totalorder %v828, 4
        %v851 = vsel %vm847, %v831, %v834
        %v852 = vsel %vm850, %v840, 2102212464
        %v853 = vsel %vm849, %v837, %v852
        %v854 = vsel %vm848, %v851, %v853
        %v855 = vsel %vm847, %v834, %v837
        %v856 = vsel %vm850, %v843, 920167782
        %v857 = vsel %vm849, %v840, %v856
        %v858 = vsel %vm848, %v855, %v857
        %v859 = vsel %vm847, %v837, %v840
        %v860 = vsel %vm850, %v846, 1326507024
        %v861 = vsel %vm849, %v843, %v860
        %v862 = vsel %vm848, %v859, %v861
        %v863 = vshll.u32 %v823, 8
        %v864 = vmul.u32.u64.compose %v863, %v862
        %v865 = vextract.low.u32 %v864
        %v866 = vextract.high.u32 %v864
        %v867 = vmul.u32.u64.compose %v863, %v858
        %v868 = vextract.low.u32 %v867
        %v869 = vextract.high.u32 %v867
        %v870 = vmul.u32 %v863, %v854
        %v871 = vadd.s32 %v866, %v868
        %vm872 = vc.u32 %v866, %v868
        %v873 = vadd.s32 %v869, 1
        %v874 = vsel %vm872, %v873, %v869
        %v875 = vadd.s32 %v870, %v874
        %v876 = vadd.s32 %v875, 536870912
        %v877 = vshrl.u32 %v876, 30
        %v878 = vshll.u32 %v877, 30
        %v879 = vsub.s32 %v875, %v878
        %vm880 = vcmp.lt.s32.totalorder %v879, 0
        %v881 = vsub.s32 0, %v879
        %v882 = vsel %vm880, %v881, %v879
        %v883 = vclz %v882
        %v884 = vsub.s32 %v883, 2
        %vm885 = vcmp.gt.s32.totalorder 0, %v884
        %v886 = vsel %vm885, 0, %v884
        %v887 = vsub.s32 32, %v886
        %v888 = vshll.u32 %v879, %v886
        %v889 = vshrl.u32 %v871, %v887
        %v890 = vor.u32 %v888, %v889
        %v891 = vsub.s32 4294967266, %v886
        %v892 = vadd.s32 %v891, 127
        %v893 = vshll.u32 %v892, 23
        %v894 = vor.u32 4788187, %v893
        %v895 = vand.u32 2147483647, %v894
        %v897 = vcvt.s32.f32 %v890
        %v898 = vmul.f32 %v897, %v895
        %v899 = vxor.u32 %v898, 2147483648
        %v900 = vsel %vm817, %v899, %v898
        %v901 = vsub.s32 4, %v877
        %v902 = vsel %vm817, %v901, %v877
        %v903 = vsel %vm816, %v790, %v900
        %v904 = vsel %vm816, 0, %v902
        %v905 = vcosq.f32.pop %v903
        %v906 = vsinq.f32.pop %v903
        %vm907 = vweird.f32 %v790
        %v908 = vadd.s32 %v904, 3
        %v909 = vand.u32 %v908, 3
        %vm910 = vcmp.lt.s32.totalorder %v909, 2
        %vm911 = vcmp.eq.s32.totalorder %v909, 0
        %v912 = vxor.u32 %v906, 2147483648
        %v913 = vsel %vm911, %v905, %v912
        %vm914 = vcmp.eq.s32.totalorder %v909, 2
        %v915 = vxor.u32 %v905, 2147483648
        %v916 = vsel %vm914, %v915, %v906
        %v917 = vsel %vm910, %v913, %v916
        %v918 = vsel %vm907, nan, %v917
        %v919 = vand.u32 2147483647, %v792
        %vm920 = vcmp.le.f32.partialorder %v919, 0.7853982
        %vm921 = vcmp.lt.s32.totalorder %v792, 0
        %v922 = vand.u32 %v792, 2139095040
        %v923 = vshrl.u32 %v922, 23
        %v924 = vsub.s32 %v923, 127
        %v925 = vand.u32 2147483647, %v792
        %v926 = vand.u32 %v925, 8388607
        %v927 = vor.u32 %v926, 8388608
        %v928 = vsub.s32 0, %v927
        %v929 = vadd.s32 %v924, 1
        %vm930 = vcmp.gt.s32.totalorder %v929, 0
        %v931 = vsel %vm930, %v929, 0
        %v932 = vshrl.u32 %v931, 5
        %v933 = vand.u32 %v931, 31
        %v934 = vsub.s32 32, %v933
        %v935 = vshrl.u32 683565275, %v934
        %v936 = vshll.u32 683565275, %v933
        %v937 = vshrl.u32 2475754826, %v934
        %v938 = vor.u32 %v936, %v937
        %v939 = vshll.u32 2475754826, %v933
        %v940 = vshrl.u32 2131351028, %v934
        %v941 = vor.u32 %v939, %v940
        %v942 = vshll.u32 2131351028, %v933
        %v943 = vshrl.u32 2102212464, %v934
        %v944 = vor.u32 %v942, %v943
        %v945 = vshll.u32 2102212464, %v933
        %v946 = vshrl.u32 920167782, %v934
        %v947 = vor.u32 %v945, %v946
        %v948 = vshll.u32 920167782, %v933
        %v949 = vshrl.u32 1326507024, %v934
        %v950 = vor.u32 %v948, %v949
        %vm951 = vcmp.lt.s32.totalorder %v932, 1
        %vm952 = vcmp.lt.s32.totalorder %v932, 2
        %vm953 = vcmp.lt.s32.totalorder %v932, 3
        %vm954 = vcmp.lt.s32.totalorder %v932, 4
        %v955 = vsel %vm951, %v935, %v938
        %v956 = vsel %vm954, %v944, 2102212464
        %v957 = vsel %vm953, %v941, %v956
        %v958 = vsel %vm952, %v955, %v957
        %v959 = vsel %vm951, %v938, %v941
        %v960 = vsel %vm954, %v947, 920167782
        %v961 = vsel %vm953, %v944, %v960
        %v962 = vsel %vm952, %v959, %v961
        %v963 = vsel %vm951, %v941, %v944
        %v964 = vsel %vm954, %v950, 1326507024
        %v965 = vsel %vm953, %v947, %v964
        %v966 = vsel %vm952, %v963, %v965
        %v967 = vshll.u32 %v927, 8
        %v968 = vmul.u32.u64.compose %v967, %v966
        %v969 = vextract.low.u32 %v968
        %v970 = vextract.high.u32 %v968
        %v971 = vmul.u32.u64.compose %v967, %v962
        %v972 = vextract.low.u32 %v971
        %v973 = vextract.high.u32 %v971
        %v974 = vmul.u32 %v967, %v958
        %v975 = vadd.s32 %v970, %v972
        %vm976 = vc.u32 %v970, %v972
        %v977 = vadd.s32 %v973, 1
        %v978 = vsel %vm976, %v977, %v973
        %v979 = vadd.s32 %v974, %v978
        %v980 = vadd.s32 %v979, 536870912
        %v981 = vshrl.u32 %v980, 30
        %v982 = vshll.u32 %v981, 30
        %v983 = vsub.s32 %v979, %v982
        %vm984 = vcmp.lt.s32.totalorder %v983, 0
        %v985 = vsub.s32 0, %v983
        %v986 = vsel %vm984, %v985, %v983
        %v987 = vclz %v986
        %v988 = vsub.s32 %v987, 2
        %vm989 = vcmp.gt.s32.totalorder 0, %v988
        %v990 = vsel %vm989, 0, %v988
        %v991 = vsub.s32 32, %v990
        %v992 = vshll.u32 %v983, %v990
        %v993 = vshrl.u32 %v975, %v991
        %v994 = vor.u32 %v992, %v993
        %v995 = vsub.s32 4294967266, %v990
        %v996 = vadd.s32 %v995, 127
        %v997 = vshll.u32 %v996, 23
        %v998 = vor.u32 4788187, %v997
        %v999 = vand.u32 2147483647, %v998
        %v1001 = vcvt.s32.f32 %v994
        %v1002 = vmul.f32 %v1001, %v999
        %v1003 = vxor.u32 %v1002, 2147483648
        %v1004 = vsel %vm921, %v1003, %v1002
        %v1005 = vsub.s32 4, %v981
        %v1006 = vsel %vm921, %v1005, %v981
        %v1007 = vsel %vm920, %v792, %v1004
        %v1008 = vsel %vm920, 0, %v1006
        %v1009 = vcosq.f32.pop %v1007
        %v1010 = vsinq.f32.pop %v1007
        %vm1011 = vweird.f32 %v792
        %v1012 = vadd.s32 %v1008, 3
        %v1013 = vand.u32 %v1012, 3
        %vm1014 = vcmp.lt.s32.totalorder %v1013, 2
        %vm1015 = vcmp.eq.s32.totalorder %v1013, 0
        %v1016 = vxor.u32 %v1010, 2147483648
        %v1017 = vsel %vm1015, %v1009, %v1016
        %vm1018 = vcmp.eq.s32.totalorder %v1013, 2
        %v1019 = vxor.u32 %v1009, 2147483648
        %v1020 = vsel %vm1018, %v1019, %v1010
        %v1021 = vsel %vm1014, %v1017, %v1020
        %v1022 = vsel %vm1011, nan, %v1021
        %v1023 = vand.u32 2147483647, %v797
        %vm1024 = vcmp.le.f32.partialorder %v1023, 0.7853982
        %vm1025 = vcmp.lt.s32.totalorder %v797, 0
        %v1026 = vand.u32 %v797, 2139095040
        %v1027 = vshrl.u32 %v1026, 23
        %v1028 = vsub.s32 %v1027, 127
        %v1029 = vand.u32 2147483647, %v797
        %v1030 = vand.u32 %v1029, 8388607
        %v1031 = vor.u32 %v1030, 8388608
        %v1032 = vsub.s32 0, %v1031
        %v1033 = vadd.s32 %v1028, 1
        %vm1034 = vcmp.gt.s32.totalorder %v1033, 0
        %v1035 = vsel %vm1034, %v1033, 0
        %v1036 = vshrl.u32 %v1035, 5
        %v1037 = vand.u32 %v1035, 31
        %v1038 = vsub.s32 32, %v1037
        %v1039 = vshrl.u32 683565275, %v1038
        %v1040 = vshll.u32 683565275, %v1037
        %v1041 = vshrl.u32 2475754826, %v1038
        %v1042 = vor.u32 %v1040, %v1041
        %v1043 = vshll.u32 2475754826, %v1037
        %v1044 = vshrl.u32 2131351028, %v1038
        %v1045 = vor.u32 %v1043, %v1044
        %v1046 = vshll.u32 2131351028, %v1037
        %v1047 = vshrl.u32 2102212464, %v1038
        %v1048 = vor.u32 %v1046, %v1047
        %v1049 = vshll.u32 2102212464, %v1037
        %v1050 = vshrl.u32 920167782, %v1038
        %v1051 = vor.u32 %v1049, %v1050
        %v1052 = vshll.u32 920167782, %v1037
        %v1053 = vshrl.u32 1326507024, %v1038
        %v1054 = vor.u32 %v1052, %v1053
        %vm1055 = vcmp.lt.s32.totalorder %v1036, 1
        %vm1056 = vcmp.lt.s32.totalorder %v1036, 2
        %vm1057 = vcmp.lt.s32.totalorder %v1036, 3
        %vm1058 = vcmp.lt.s32.totalorder %v1036, 4
        %v1059 = vsel %vm1055, %v1039, %v1042
        %v1060 = vsel %vm1058, %v1048, 2102212464
        %v1061 = vsel %vm1057, %v1045, %v1060
        %v1062 = vsel %vm1056, %v1059, %v1061
        %v1063 = vsel %vm1055, %v1042, %v1045
        %v1064 = vsel %vm1058, %v1051, 920167782
        %v1065 = vsel %vm1057, %v1048, %v1064
        %v1066 = vsel %vm1056, %v1063, %v1065
        %v1067 = vsel %vm1055, %v1045, %v1048
        %v1068 = vsel %vm1058, %v1054, 1326507024
        %v1069 = vsel %vm1057, %v1051, %v1068
        %v1070 = vsel %vm1056, %v1067, %v1069
        %v1071 = vshll.u32 %v1031, 8
        %v1072 = vmul.u32.u64.compose %v1071, %v1070
        %v1073 = vextract.low.u32 %v1072
        %v1074 = vextract.high.u32 %v1072
        %v1075 = vmul.u32.u64.compose %v1071, %v1066
        %v1076 = vextract.low.u32 %v1075
        %v1077 = vextract.high.u32 %v1075
        %v1078 = vmul.u32 %v1071, %v1062
        %v1079 = vadd.s32 %v1074, %v1076
        %vm1080 = vc.u32 %v1074, %v1076
        %v1081 = vadd.s32 %v1077, 1
        %v1082 = vsel %vm1080, %v1081, %v1077
        %v1083 = vadd.s32 %v1078, %v1082
        %v1084 = vadd.s32 %v1083, 536870912
        %v1085 = vshrl.u32 %v1084, 30
        %v1086 = vshll.u32 %v1085, 30
        %v1087 = vsub.s32 %v1083, %v1086
        %vm1088 = vcmp.lt.s32.totalorder %v1087, 0
        %v1089 = vsub.s32 0, %v1087
        %v1090 = vsel %vm1088, %v1089, %v1087
        %v1091 = vclz %v1090
        %v1092 = vsub.s32 %v1091, 2
        %vm1093 = vcmp.gt.s32.totalorder 0, %v1092
        %v1094 = vsel %vm1093, 0, %v1092
        %v1095 = vsub.s32 32, %v1094
        %v1096 = vshll.u32 %v1087, %v1094
        %v1097 = vshrl.u32 %v1079, %v1095
        %v1098 = vor.u32 %v1096, %v1097
        %v1099 = vsub.s32 4294967266, %v1094
        %v1100 = vadd.s32 %v1099, 127
        %v1101 = vshll.u32 %v1100, 23
        %v1102 = vor.u32 4788187, %v1101
        %v1103 = vand.u32 2147483647, %v1102
        %v1105 = vcvt.s32.f32 %v1098
        %v1106 = vmul.f32 %v1105, %v1103
        %v1107 = vxor.u32 %v1106, 2147483648
        %v1108 = vsel %vm1025, %v1107, %v1106
        %v1109 = vsub.s32 4, %v1085
        %v1110 = vsel %vm1025, %v1109, %v1085
        %v1111 = vsel %vm1024, %v797, %v1108
        %v1112 = vsel %vm1024, 0, %v1110
        %v1113 = vcosq.f32.pop %v1111
        %v1114 = vsinq.f32.pop %v1111
        %vm1115 = vweird.f32 %v797
        %v1116 = vadd.s32 %v1112, 3
        %v1117 = vand.u32 %v1116, 3
        %vm1118 = vcmp.lt.s32.totalorder %v1117, 2
        %vm1119 = vcmp.eq.s32.totalorder %v1117, 0
        %v1120 = vxor.u32 %v1114, 2147483648
        %v1121 = vsel %vm1119, %v1113, %v1120
        %vm1122 = vcmp.eq.s32.totalorder %v1117, 2
        %v1123 = vxor.u32 %v1113, 2147483648
        %v1124 = vsel %vm1122, %v1123, %v1114
        %v1125 = vsel %vm1118, %v1121, %v1124
        %v1126 = vsel %vm1115, nan, %v1125
        %v1127 = vand.u32 2147483647, %v799
        %vm1128 = vcmp.le.f32.partialorder %v1127, 0.7853982
        %vm1129 = vcmp.lt.s32.totalorder %v799, 0
        %v1130 = vand.u32 %v799, 2139095040
        %v1131 = vshrl.u32 %v1130, 23
        %v1132 = vsub.s32 %v1131, 127
        %v1133 = vand.u32 2147483647, %v799
        %v1134 = vand.u32 %v1133, 8388607
        %v1135 = vor.u32 %v1134, 8388608
        %v1136 = vsub.s32 0, %v1135
        %v1137 = vadd.s32 %v1132, 1
        %vm1138 = vcmp.gt.s32.totalorder %v1137, 0
        %v1139 = vsel %vm1138, %v1137, 0
        %v1140 = vshrl.u32 %v1139, 5
        %v1141 = vand.u32 %v1139, 31
        %v1142 = vsub.s32 32, %v1141
        %v1143 = vshrl.u32 683565275, %v1142
        %v1144 = vshll.u32 683565275, %v1141
        %v1145 = vshrl.u32 2475754826, %v1142
        %v1146 = vor.u32 %v1144, %v1145
        %v1147 = vshll.u32 2475754826, %v1141
        %v1148 = vshrl.u32 2131351028, %v1142
        %v1149 = vor.u32 %v1147, %v1148
        %v1150 = vshll.u32 2131351028, %v1141
        %v1151 = vshrl.u32 2102212464, %v1142
        %v1152 = vor.u32 %v1150, %v1151
        %v1153 = vshll.u32 2102212464, %v1141
        %v1154 = vshrl.u32 920167782, %v1142
        %v1155 = vor.u32 %v1153, %v1154
        %v1156 = vshll.u32 920167782, %v1141
        %v1157 = vshrl.u32 1326507024, %v1142
        %v1158 = vor.u32 %v1156, %v1157
        %vm1159 = vcmp.lt.s32.totalorder %v1140, 1
        %vm1160 = vcmp.lt.s32.totalorder %v1140, 2
        %vm1161 = vcmp.lt.s32.totalorder %v1140, 3
        %vm1162 = vcmp.lt.s32.totalorder %v1140, 4
        %v1163 = vsel %vm1159, %v1143, %v1146
        %v1164 = vsel %vm1162, %v1152, 2102212464
        %v1165 = vsel %vm1161, %v1149, %v1164
        %v1166 = vsel %vm1160, %v1163, %v1165
        %v1167 = vsel %vm1159, %v1146, %v1149
        %v1168 = vsel %vm1162, %v1155, 920167782
        %v1169 = vsel %vm1161, %v1152, %v1168
        %v1170 = vsel %vm1160, %v1167, %v1169
        %v1171 = vsel %vm1159, %v1149, %v1152
        %v1172 = vsel %vm1162, %v1158, 1326507024
        %v1173 = vsel %vm1161, %v1155, %v1172
        %v1174 = vsel %vm1160, %v1171, %v1173
        %v1175 = vshll.u32 %v1135, 8
        %v1176 = vmul.u32.u64.compose %v1175, %v1174
        %v1177 = vextract.low.u32 %v1176
        %v1178 = vextract.high.u32 %v1176
        %v1179 = vmul.u32.u64.compose %v1175, %v1170
        %v1180 = vextract.low.u32 %v1179
        %v1181 = vextract.high.u32 %v1179
        %v1182 = vmul.u32 %v1175, %v1166
        %v1183 = vadd.s32 %v1178, %v1180
        %vm1184 = vc.u32 %v1178, %v1180
        %v1185 = vadd.s32 %v1181, 1
        %v1186 = vsel %vm1184, %v1185, %v1181
        %v1187 = vadd.s32 %v1182, %v1186
        %v1188 = vadd.s32 %v1187, 536870912
        %v1189 = vshrl.u32 %v1188, 30
        %v1190 = vshll.u32 %v1189, 30
        %v1191 = vsub.s32 %v1187, %v1190
        %vm1192 = vcmp.lt.s32.totalorder %v1191, 0
        %v1193 = vsub.s32 0, %v1191
        %v1194 = vsel %vm1192, %v1193, %v1191
        %v1195 = vclz %v1194
        %v1196 = vsub.s32 %v1195, 2
        %vm1197 = vcmp.gt.s32.totalorder 0, %v1196
        %v1198 = vsel %vm1197, 0, %v1196
        %v1199 = vsub.s32 32, %v1198
        %v1200 = vshll.u32 %v1191, %v1198
        %v1201 = vshrl.u32 %v1183, %v1199
        %v1202 = vor.u32 %v1200, %v1201
        %v1203 = vsub.s32 4294967266, %v1198
        %v1204 = vadd.s32 %v1203, 127
        %v1205 = vshll.u32 %v1204, 23
        %v1206 = vor.u32 4788187, %v1205
        %v1207 = vand.u32 2147483647, %v1206
        %v1209 = vcvt.s32.f32 %v1202
        %v1210 = vmul.f32 %v1209, %v1207
        %v1211 = vxor.u32 %v1210, 2147483648
        %v1212 = vsel %vm1129, %v1211, %v1210
        %v1213 = vsub.s32 4, %v1189
        %v1214 = vsel %vm1129, %v1213, %v1189
        %v1215 = vsel %vm1128, %v799, %v1212
        %v1216 = vsel %vm1128, 0, %v1214
        %v1217 = vcosq.f32.pop %v1215
        %v1218 = vsinq.f32.pop %v1215
        %vm1219 = vweird.f32 %v799
        %v1220 = vadd.s32 %v1216, 3
        %v1221 = vand.u32 %v1220, 3
        %vm1222 = vcmp.lt.s32.totalorder %v1221, 2
        %vm1223 = vcmp.eq.s32.totalorder %v1221, 0
        %v1224 = vxor.u32 %v1218, 2147483648
        %v1225 = vsel %vm1223, %v1217, %v1224
        %vm1226 = vcmp.eq.s32.totalorder %v1221, 2
        %v1227 = vxor.u32 %v1217, 2147483648
        %v1228 = vsel %vm1226, %v1227, %v1218
        %v1229 = vsel %vm1222, %v1225, %v1228
        %v1230 = vsel %vm1219, nan, %v1229
        %v1231 = vand.u32 2147483647, %v804
        %vm1232 = vcmp.le.f32.partialorder %v1231, 0.7853982
        %vm1233 = vcmp.lt.s32.totalorder %v804, 0
        %v1234 = vand.u32 %v804, 2139095040
        %v1235 = vshrl.u32 %v1234, 23
        %v1236 = vsub.s32 %v1235, 127
        %v1237 = vand.u32 2147483647, %v804
        %v1238 = vand.u32 %v1237, 8388607
        %v1239 = vor.u32 %v1238, 8388608
        %v1240 = vsub.s32 0, %v1239
        %v1241 = vadd.s32 %v1236, 1
        %vm1242 = vcmp.gt.s32.totalorder %v1241, 0
        %v1243 = vsel %vm1242, %v1241, 0
        %v1244 = vshrl.u32 %v1243, 5
        %v1245 = vand.u32 %v1243, 31
        %v1246 = vsub.s32 32, %v1245
        %v1247 = vshrl.u32 683565275, %v1246
        %v1248 = vshll.u32 683565275, %v1245
        %v1249 = vshrl.u32 2475754826, %v1246
        %v1250 = vor.u32 %v1248, %v1249
        %v1251 = vshll.u32 2475754826, %v1245
        %v1252 = vshrl.u32 2131351028, %v1246
        %v1253 = vor.u32 %v1251, %v1252
        %v1254 = vshll.u32 2131351028, %v1245
        %v1255 = vshrl.u32 2102212464, %v1246
        %v1256 = vor.u32 %v1254, %v1255
        %v1257 = vshll.u32 2102212464, %v1245
        %v1258 = vshrl.u32 920167782, %v1246
        %v1259 = vor.u32 %v1257, %v1258
        %v1260 = vshll.u32 920167782, %v1245
        %v1261 = vshrl.u32 1326507024, %v1246
        %v1262 = vor.u32 %v1260, %v1261
        %vm1263 = vcmp.lt.s32.totalorder %v1244, 1
        %vm1264 = vcmp.lt.s32.totalorder %v1244, 2
        %vm1265 = vcmp.lt.s32.totalorder %v1244, 3
        %vm1266 = vcmp.lt.s32.totalorder %v1244, 4
        %v1267 = vsel %vm1263, %v1247, %v1250
        %v1268 = vsel %vm1266, %v1256, 2102212464
        %v1269 = vsel %vm1265, %v1253, %v1268
        %v1270 = vsel %vm1264, %v1267, %v1269
        %v1271 = vsel %vm1263, %v1250, %v1253
        %v1272 = vsel %vm1266, %v1259, 920167782
        %v1273 = vsel %vm1265, %v1256, %v1272
        %v1274 = vsel %vm1264, %v1271, %v1273
        %v1275 = vsel %vm1263, %v1253, %v1256
        %v1276 = vsel %vm1266, %v1262, 1326507024
        %v1277 = vsel %vm1265, %v1259, %v1276
        %v1278 = vsel %vm1264, %v1275, %v1277
        %v1279 = vshll.u32 %v1239, 8
        %v1280 = vmul.u32.u64.compose %v1279, %v1278
        %v1281 = vextract.low.u32 %v1280
        %v1282 = vextract.high.u32 %v1280
        %v1283 = vmul.u32.u64.compose %v1279, %v1274
        %v1284 = vextract.low.u32 %v1283
        %v1285 = vextract.high.u32 %v1283
        %v1286 = vmul.u32 %v1279, %v1270
        %v1287 = vadd.s32 %v1282, %v1284
        %vm1288 = vc.u32 %v1282, %v1284
        %v1289 = vadd.s32 %v1285, 1
        %v1290 = vsel %vm1288, %v1289, %v1285
        %v1291 = vadd.s32 %v1286, %v1290
        %v1292 = vadd.s32 %v1291, 536870912
        %v1293 = vshrl.u32 %v1292, 30
        %v1294 = vshll.u32 %v1293, 30
        %v1295 = vsub.s32 %v1291, %v1294
        %vm1296 = vcmp.lt.s32.totalorder %v1295, 0
        %v1297 = vsub.s32 0, %v1295
        %v1298 = vsel %vm1296, %v1297, %v1295
        %v1299 = vclz %v1298
        %v1300 = vsub.s32 %v1299, 2
        %vm1301 = vcmp.gt.s32.totalorder 0, %v1300
        %v1302 = vsel %vm1301, 0, %v1300
        %v1303 = vsub.s32 32, %v1302
        %v1304 = vshll.u32 %v1295, %v1302
        %v1305 = vshrl.u32 %v1287, %v1303
        %v1306 = vor.u32 %v1304, %v1305
        %v1307 = vsub.s32 4294967266, %v1302
        %v1308 = vadd.s32 %v1307, 127
        %v1309 = vshll.u32 %v1308, 23
        %v1310 = vor.u32 4788187, %v1309
        %v1311 = vand.u32 2147483647, %v1310
        %v1313 = vcvt.s32.f32 %v1306
        %v1314 = vmul.f32 %v1313, %v1311
        %v1315 = vxor.u32 %v1314, 2147483648
        %v1316 = vsel %vm1233, %v1315, %v1314
        %v1317 = vsub.s32 4, %v1293
        %v1318 = vsel %vm1233, %v1317, %v1293
        %v1319 = vsel %vm1232, %v804, %v1316
        %v1320 = vsel %vm1232, 0, %v1318
        %v1321 = vcosq.f32.pop %v1319
        %v1322 = vsinq.f32.pop %v1319
        %vm1323 = vweird.f32 %v804
        %v1324 = vadd.s32 %v1320, 3
        %v1325 = vand.u32 %v1324, 3
        %vm1326 = vcmp.lt.s32.totalorder %v1325, 2
        %vm1327 = vcmp.eq.s32.totalorder %v1325, 0
        %v1328 = vxor.u32 %v1322, 2147483648
        %v1329 = vsel %vm1327, %v1321, %v1328
        %vm1330 = vcmp.eq.s32.totalorder %v1325, 2
        %v1331 = vxor.u32 %v1321, 2147483648
        %v1332 = vsel %vm1330, %v1331, %v1322
        %v1333 = vsel %vm1326, %v1329, %v1332
        %v1334 = vsel %vm1323, nan, %v1333
        %v1335 = vand.u32 2147483647, %v806
        %vm1336 = vcmp.le.f32.partialorder %v1335, 0.7853982
        %vm1337 = vcmp.lt.s32.totalorder %v806, 0
        %v1338 = vand.u32 %v806, 2139095040
        %v1339 = vshrl.u32 %v1338, 23
        %v1340 = vsub.s32 %v1339, 127
        %v1341 = vand.u32 2147483647, %v806
        %v1342 = vand.u32 %v1341, 8388607
        %v1343 = vor.u32 %v1342, 8388608
        %v1344 = vsub.s32 0, %v1343
        %v1345 = vadd.s32 %v1340, 1
        %vm1346 = vcmp.gt.s32.totalorder %v1345, 0
        %v1347 = vsel %vm1346, %v1345, 0
        %v1348 = vshrl.u32 %v1347, 5
        %v1349 = vand.u32 %v1347, 31
        %v1350 = vsub.s32 32, %v1349
        %v1351 = vshrl.u32 683565275, %v1350
        %v1352 = vshll.u32 683565275, %v1349
        %v1353 = vshrl.u32 2475754826, %v1350
        %v1354 = vor.u32 %v1352, %v1353
        %v1355 = vshll.u32 2475754826, %v1349
        %v1356 = vshrl.u32 2131351028, %v1350
        %v1357 = vor.u32 %v1355, %v1356
        %v1358 = vshll.u32 2131351028, %v1349
        %v1359 = vshrl.u32 2102212464, %v1350
        %v1360 = vor.u32 %v1358, %v1359
        %v1361 = vshll.u32 2102212464, %v1349
        %v1362 = vshrl.u32 920167782, %v1350
        %v1363 = vor.u32 %v1361, %v1362
        %v1364 = vshll.u32 920167782, %v1349
        %v1365 = vshrl.u32 1326507024, %v1350
        %v1366 = vor.u32 %v1364, %v1365
        %vm1367 = vcmp.lt.s32.totalorder %v1348, 1
        %vm1368 = vcmp.lt.s32.totalorder %v1348, 2
        %vm1369 = vcmp.lt.s32.totalorder %v1348, 3
        %vm1370 = vcmp.lt.s32.totalorder %v1348, 4
        %v1371 = vsel %vm1367, %v1351, %v1354
        %v1372 = vsel %vm1370, %v1360, 2102212464
        %v1373 = vsel %vm1369, %v1357, %v1372
        %v1374 = vsel %vm1368, %v1371, %v1373
        %v1375 = vsel %vm1367, %v1354, %v1357
        %v1376 = vsel %vm1370, %v1363, 920167782
        %v1377 = vsel %vm1369, %v1360, %v1376
        %v1378 = vsel %vm1368, %v1375, %v1377
        %v1379 = vsel %vm1367, %v1357, %v1360
        %v1380 = vsel %vm1370, %v1366, 1326507024
        %v1381 = vsel %vm1369, %v1363, %v1380
        %v1382 = vsel %vm1368, %v1379, %v1381
        %v1383 = vshll.u32 %v1343, 8
        %v1384 = vmul.u32.u64.compose %v1383, %v1382
        %v1385 = vextract.low.u32 %v1384
        %v1386 = vextract.high.u32 %v1384
        %v1387 = vmul.u32.u64.compose %v1383, %v1378
        %v1388 = vextract.low.u32 %v1387
        %v1389 = vextract.high.u32 %v1387
        %v1390 = vmul.u32 %v1383, %v1374
        %v1391 = vadd.s32 %v1386, %v1388
        %vm1392 = vc.u32 %v1386, %v1388
        %v1393 = vadd.s32 %v1389, 1
        %v1394 = vsel %vm1392, %v1393, %v1389
        %v1395 = vadd.s32 %v1390, %v1394
        %v1396 = vadd.s32 %v1395, 536870912
        %v1397 = vshrl.u32 %v1396, 30
        %v1398 = vshll.u32 %v1397, 30
        %v1399 = vsub.s32 %v1395, %v1398
        %vm1400 = vcmp.lt.s32.totalorder %v1399, 0
        %v1401 = vsub.s32 0, %v1399
        %v1402 = vsel %vm1400, %v1401, %v1399
        %v1403 = vclz %v1402
        %v1404 = vsub.s32 %v1403, 2
        %vm1405 = vcmp.gt.s32.totalorder 0, %v1404
        %v1406 = vsel %vm1405, 0, %v1404
        %v1407 = vsub.s32 32, %v1406
        %v1408 = vshll.u32 %v1399, %v1406
        %v1409 = vshrl.u32 %v1391, %v1407
        %v1410 = vor.u32 %v1408, %v1409
        %v1411 = vsub.s32 4294967266, %v1406
        %v1412 = vadd.s32 %v1411, 127
        %v1413 = vshll.u32 %v1412, 23
        %v1414 = vor.u32 4788187, %v1413
        %v1415 = vand.u32 2147483647, %v1414
        %v1417 = vcvt.s32.f32 %v1410
        %v1418 = vmul.f32 %v1417, %v1415
        %v1419 = vxor.u32 %v1418, 2147483648
        %v1420 = vsel %vm1337, %v1419, %v1418
        %v1421 = vsub.s32 4, %v1397
        %v1422 = vsel %vm1337, %v1421, %v1397
        %v1423 = vsel %vm1336, %v806, %v1420
        %v1424 = vsel %vm1336, 0, %v1422
        %v1425 = vcosq.f32.pop %v1423
        %v1426 = vsinq.f32.pop %v1423
        %vm1427 = vweird.f32 %v806
        %v1428 = vadd.s32 %v1424, 3
        %v1429 = vand.u32 %v1428, 3
        %vm1430 = vcmp.lt.s32.totalorder %v1429, 2
        %vm1431 = vcmp.eq.s32.totalorder %v1429, 0
        %v1432 = vxor.u32 %v1426, 2147483648
        %v1433 = vsel %vm1431, %v1425, %v1432
        %vm1434 = vcmp.eq.s32.totalorder %v1429, 2
        %v1435 = vxor.u32 %v1425, 2147483648
        %v1436 = vsel %vm1434, %v1435, %v1426
        %v1437 = vsel %vm1430, %v1433, %v1436
        %v1438 = vsel %vm1427, nan, %v1437
        %v1439 = vand.u32 2147483647, %v811
        %vm1440 = vcmp.le.f32.partialorder %v1439, 0.7853982
        %vm1441 = vcmp.lt.s32.totalorder %v811, 0
        %v1442 = vand.u32 %v811, 2139095040
        %v1443 = vshrl.u32 %v1442, 23
        %v1444 = vsub.s32 %v1443, 127
        %v1445 = vand.u32 2147483647, %v811
        %v1446 = vand.u32 %v1445, 8388607
        %v1447 = vor.u32 %v1446, 8388608
        %v1448 = vsub.s32 0, %v1447
        %v1449 = vadd.s32 %v1444, 1
        %vm1450 = vcmp.gt.s32.totalorder %v1449, 0
        %v1451 = vsel %vm1450, %v1449, 0
        %v1452 = vshrl.u32 %v1451, 5
        %v1453 = vand.u32 %v1451, 31
        %v1454 = vsub.s32 32, %v1453
        %v1455 = vshrl.u32 683565275, %v1454
        %v1456 = vshll.u32 683565275, %v1453
        %v1457 = vshrl.u32 2475754826, %v1454
        %v1458 = vor.u32 %v1456, %v1457
        %v1459 = vshll.u32 2475754826, %v1453
        %v1460 = vshrl.u32 2131351028, %v1454
        %v1461 = vor.u32 %v1459, %v1460
        %v1462 = vshll.u32 2131351028, %v1453
        %v1463 = vshrl.u32 2102212464, %v1454
        %v1464 = vor.u32 %v1462, %v1463
        %v1465 = vshll.u32 2102212464, %v1453
        %v1466 = vshrl.u32 920167782, %v1454
        %v1467 = vor.u32 %v1465, %v1466
        %v1468 = vshll.u32 920167782, %v1453
        %v1469 = vshrl.u32 1326507024, %v1454
        %v1470 = vor.u32 %v1468, %v1469
        %vm1471 = vcmp.lt.s32.totalorder %v1452, 1
        %vm1472 = vcmp.lt.s32.totalorder %v1452, 2
        %vm1473 = vcmp.lt.s32.totalorder %v1452, 3
        %vm1474 = vcmp.lt.s32.totalorder %v1452, 4
        %v1475 = vsel %vm1471, %v1455, %v1458
        %v1476 = vsel %vm1474, %v1464, 2102212464
        %v1477 = vsel %vm1473, %v1461, %v1476
        %v1478 = vsel %vm1472, %v1475, %v1477
        %v1479 = vsel %vm1471, %v1458, %v1461
        %v1480 = vsel %vm1474, %v1467, 920167782
        %v1481 = vsel %vm1473, %v1464, %v1480
        %v1482 = vsel %vm1472, %v1479, %v1481
        %v1483 = vsel %vm1471, %v1461, %v1464
        %v1484 = vsel %vm1474, %v1470, 1326507024
        %v1485 = vsel %vm1473, %v1467, %v1484
        %v1486 = vsel %vm1472, %v1483, %v1485
        %v1487 = vshll.u32 %v1447, 8
        %v1488 = vmul.u32.u64.compose %v1487, %v1486
        %v1489 = vextract.low.u32 %v1488
        %v1490 = vextract.high.u32 %v1488
        %v1491 = vmul.u32.u64.compose %v1487, %v1482
        %v1492 = vextract.low.u32 %v1491
        %v1493 = vextract.high.u32 %v1491
        %v1494 = vmul.u32 %v1487, %v1478
        %v1495 = vadd.s32 %v1490, %v1492
        %vm1496 = vc.u32 %v1490, %v1492
        %v1497 = vadd.s32 %v1493, 1
        %v1498 = vsel %vm1496, %v1497, %v1493
        %v1499 = vadd.s32 %v1494, %v1498
        %v1500 = vadd.s32 %v1499, 536870912
        %v1501 = vshrl.u32 %v1500, 30
        %v1502 = vshll.u32 %v1501, 30
        %v1503 = vsub.s32 %v1499, %v1502
        %vm1504 = vcmp.lt.s32.totalorder %v1503, 0
        %v1505 = vsub.s32 0, %v1503
        %v1506 = vsel %vm1504, %v1505, %v1503
        %v1507 = vclz %v1506
        %v1508 = vsub.s32 %v1507, 2
        %vm1509 = vcmp.gt.s32.totalorder 0, %v1508
        %v1510 = vsel %vm1509, 0, %v1508
        %v1511 = vsub.s32 32, %v1510
        %v1512 = vshll.u32 %v1503, %v1510
        %v1513 = vshrl.u32 %v1495, %v1511
        %v1514 = vor.u32 %v1512, %v1513
        %v1515 = vsub.s32 4294967266, %v1510
        %v1516 = vadd.s32 %v1515, 127
        %v1517 = vshll.u32 %v1516, 23
        %v1518 = vor.u32 4788187, %v1517
        %v1519 = vand.u32 2147483647, %v1518
        %v1521 = vcvt.s32.f32 %v1514
        %v1522 = vmul.f32 %v1521, %v1519
        %v1523 = vxor.u32 %v1522, 2147483648
        %v1524 = vsel %vm1441, %v1523, %v1522
        %v1525 = vsub.s32 4, %v1501
        %v1526 = vsel %vm1441, %v1525, %v1501
        %v1527 = vsel %vm1440, %v811, %v1524
        %v1528 = vsel %vm1440, 0, %v1526
        %v1529 = vcosq.f32.pop %v1527
        %v1530 = vsinq.f32.pop %v1527
        %vm1531 = vweird.f32 %v811
        %v1532 = vadd.s32 %v1528, 3
        %v1533 = vand.u32 %v1532, 3
        %vm1534 = vcmp.lt.s32.totalorder %v1533, 2
        %vm1535 = vcmp.eq.s32.totalorder %v1533, 0
        %v1536 = vxor.u32 %v1530, 2147483648
        %v1537 = vsel %vm1535, %v1529, %v1536
        %vm1538 = vcmp.eq.s32.totalorder %v1533, 2
        %v1539 = vxor.u32 %v1529, 2147483648
        %v1540 = vsel %vm1538, %v1539, %v1530
        %v1541 = vsel %vm1534, %v1537, %v1540
        %v1542 = vsel %vm1531, nan, %v1541
        %v1543 = vand.u32 2147483647, %v813
        %vm1544 = vcmp.le.f32.partialorder %v1543, 0.7853982
        %vm1545 = vcmp.lt.s32.totalorder %v813, 0
        %v1546 = vand.u32 %v813, 2139095040
        %v1547 = vshrl.u32 %v1546, 23
        %v1548 = vsub.s32 %v1547, 127
        %v1549 = vand.u32 2147483647, %v813
        %v1550 = vand.u32 %v1549, 8388607
        %v1551 = vor.u32 %v1550, 8388608
        %v1552 = vsub.s32 0, %v1551
        %v1553 = vadd.s32 %v1548, 1
        %vm1554 = vcmp.gt.s32.totalorder %v1553, 0
        %v1555 = vsel %vm1554, %v1553, 0
        %v1556 = vshrl.u32 %v1555, 5
        %v1557 = vand.u32 %v1555, 31
        %v1558 = vsub.s32 32, %v1557
        %v1559 = vshrl.u32 683565275, %v1558
        %v1560 = vshll.u32 683565275, %v1557
        %v1561 = vshrl.u32 2475754826, %v1558
        %v1562 = vor.u32 %v1560, %v1561
        %v1563 = vshll.u32 2475754826, %v1557
        %v1564 = vshrl.u32 2131351028, %v1558
        %v1565 = vor.u32 %v1563, %v1564
        %v1566 = vshll.u32 2131351028, %v1557
        %v1567 = vshrl.u32 2102212464, %v1558
        %v1568 = vor.u32 %v1566, %v1567
        %v1569 = vshll.u32 2102212464, %v1557
        %v1570 = vshrl.u32 920167782, %v1558
        %v1571 = vor.u32 %v1569, %v1570
        %v1572 = vshll.u32 920167782, %v1557
        %v1573 = vshrl.u32 1326507024, %v1558
        %v1574 = vor.u32 %v1572, %v1573
        %vm1575 = vcmp.lt.s32.totalorder %v1556, 1
        %vm1576 = vcmp.lt.s32.totalorder %v1556, 2
        %vm1577 = vcmp.lt.s32.totalorder %v1556, 3
        %vm1578 = vcmp.lt.s32.totalorder %v1556, 4
        %v1579 = vsel %vm1575, %v1559, %v1562
        %v1580 = vsel %vm1578, %v1568, 2102212464
        %v1581 = vsel %vm1577, %v1565, %v1580
        %v1582 = vsel %vm1576, %v1579, %v1581
        %v1583 = vsel %vm1575, %v1562, %v1565
        %v1584 = vsel %vm1578, %v1571, 920167782
        %v1585 = vsel %vm1577, %v1568, %v1584
        %v1586 = vsel %vm1576, %v1583, %v1585
        %v1587 = vsel %vm1575, %v1565, %v1568
        %v1588 = vsel %vm1578, %v1574, 1326507024
        %v1589 = vsel %vm1577, %v1571, %v1588
        %v1590 = vsel %vm1576, %v1587, %v1589
        %v1591 = vshll.u32 %v1551, 8
        %v1592 = vmul.u32.u64.compose %v1591, %v1590
        %v1593 = vextract.low.u32 %v1592
        %v1594 = vextract.high.u32 %v1592
        %v1595 = vmul.u32.u64.compose %v1591, %v1586
        %v1596 = vextract.low.u32 %v1595
        %v1597 = vextract.high.u32 %v1595
        %v1598 = vmul.u32 %v1591, %v1582
        %v1599 = vadd.s32 %v1594, %v1596
        %vm1600 = vc.u32 %v1594, %v1596
        %v1601 = vadd.s32 %v1597, 1
        %v1602 = vsel %vm1600, %v1601, %v1597
        %v1603 = vadd.s32 %v1598, %v1602
        %v1604 = vadd.s32 %v1603, 536870912
        %v1605 = vshrl.u32 %v1604, 30
        %v1606 = vshll.u32 %v1605, 30
        %v1607 = vsub.s32 %v1603, %v1606
        %vm1608 = vcmp.lt.s32.totalorder %v1607, 0
        %v1609 = vsub.s32 0, %v1607
        %v1610 = vsel %vm1608, %v1609, %v1607
        %v1611 = vclz %v1610
        %v1612 = vsub.s32 %v1611, 2
        %vm1613 = vcmp.gt.s32.totalorder 0, %v1612
        %v1614 = vsel %vm1613, 0, %v1612
        %v1615 = vsub.s32 32, %v1614
        %v1616 = vshll.u32 %v1607, %v1614
        %v1617 = vshrl.u32 %v1599, %v1615
        %v1618 = vor.u32 %v1616, %v1617
        %v1619 = vsub.s32 4294967266, %v1614
        %v1620 = vadd.s32 %v1619, 127
        %v1621 = vshll.u32 %v1620, 23
        %v1622 = vor.u32 4788187, %v1621
        %v1623 = vand.u32 2147483647, %v1622
        %v1625 = vcvt.s32.f32 %v1618
        %v1626 = vmul.f32 %v1625, %v1623
        %v1627 = vxor.u32 %v1626, 2147483648
        %v1628 = vsel %vm1545, %v1627, %v1626
        %v1629 = vsub.s32 4, %v1605
        %v1630 = vsel %vm1545, %v1629, %v1605
        %v1631 = vsel %vm1544, %v813, %v1628
        %v1632 = vsel %vm1544, 0, %v1630
        %v1633 = vcosq.f32.pop %v1631
        %v1634 = vsinq.f32.pop %v1631
        %vm1635 = vweird.f32 %v813
        %v1636 = vadd.s32 %v1632, 3
        %v1637 = vand.u32 %v1636, 3
        %vm1638 = vcmp.lt.s32.totalorder %v1637, 2
        %vm1639 = vcmp.eq.s32.totalorder %v1637, 0
        %v1640 = vxor.u32 %v1634, 2147483648
        %v1641 = vsel %vm1639, %v1633, %v1640
        %vm1642 = vcmp.eq.s32.totalorder %v1637, 2
        %v1643 = vxor.u32 %v1633, 2147483648
        %v1644 = vsel %vm1642, %v1643, %v1634
        %v1645 = vsel %vm1638, %v1641, %v1644
        %v1646 = vsel %vm1635, nan, %v1645
        %1647 = vst [vmem:[%s164] sm:$0xff] %v918
        %1648 = vst [vmem:[%s164 + $0x8] sm:$0xff] %v1022
        %1649 = vst [vmem:[%s164 + $0x10] sm:$0xff] %v1126
        %1650 = vst [vmem:[%s164 + $0x18] sm:$0xff] %v1230
        %1651 = vst [vmem:[%s164 + $0x20] sm:$0xff] %v1334
        %1652 = vst [vmem:[%s164 + $0x28] sm:$0xff] %v1438
        %1653 = vst [vmem:[%s164 + $0x30] sm:$0xff] %v1542
        %1654 = vst [vmem:[%s164 + $0x38] sm:$0xff] %v1646
        %s1655 = sand.u32 %s93, 1
        %s1656 = scalar_lea.sflag [#allocation3], %s1655
        %s1657 = sand.u32 %s93, 1
        %s1658 = smul.addr %s1657, 64
        %s1659 = scalar_lea.vmem [#allocation2], %s1658
        // Predicated region
        $region33: #{tpu_custom_call.1} parent=31 // pred_check
          %p1660 = pneg %p103
        $region34: #{tpu_custom_call.1} parent=31 // pred_check_branch
          %1662 = sbr.rel (%p1660) target = $region36
        $region35: #{tpu_custom_call.1} parent=31 // pred_region
          %s1663 = smul.u32 4, %s17
          %s1665 = ssub.s32 1024, 1024
          %1666 = vsyncadd %s1656, %s1665
          %s1667 = smul.addr %s1663, 2
          %s1668 = smul.addr %s1667, 128
          %s1669 = scalar_lea.hbm %s3, %s1668
          %s1670 = sshll.u32 %s1659, 4
          %s1671 = int_to_ptr.vmem [resolvable:$true] %s1670
          %1676 = dma.vmem_to_hbm [thread:$0]  %s1671, 1024, %s1669, %s1656, 256, 256, 16
        $region36: #{tpu_custom_call.1} parent=31 // pred_fallthru
          _
      $region32: #{tpu_custom_call.1} parent=5 // pred_fallthru
        _
      %p1677 = scmp.le.s32.totalorder 2, %s12
      // Predicated region
      $region37: #{tpu_custom_call.1} parent=5 // pred_check
        %p1678 = pneg %p1677
      $region38: #{tpu_custom_call.1} parent=5 // pred_check_branch
        %1680 = sbr.rel (%p1678) target = $region40
      $region39: #{tpu_custom_call.1} parent=5 // pred_region
        %s1681 = ssub.s32 %s12, 2
        // Predicated region
        $region41: #{tpu_custom_call.1} parent=39 // pred_check
          %p1682 = pneg %p109
        $region42: #{tpu_custom_call.1} parent=39 // pred_check_branch
          %1684 = sbr.rel (%p1682) target = $region44
        $region43: #{tpu_custom_call.1} parent=39 // pred_region
          %s1685 = sand.u32 %s94, 1
          %s1686 = scalar_lea.sflag [#allocation3], %s1685
          %s1687 = sand.u32 %s94, 1
          %s1688 = smul.addr %s1687, 64
          %s1689 = scalar_lea.vmem [#allocation2], %s1688
          %1690 = dma.done %s1686, 1024
        $region44: #{tpu_custom_call.1} parent=39 // pred_fallthru
          _
      $region40: #{tpu_custom_call.1} parent=5 // pred_fallthru
        _
    $region6: #{tpu_custom_call.1} parent=1 // loop_footer
      %s16 = sadd.s32 1, %s12
    $region7: #{tpu_custom_call.1} parent=1 // loop_footer_branch
      %11 = sbr.rel target = $region3
    $region8: #{tpu_custom_call.1} parent=1 // loop_exit
      _
    %1691 = vsyncpa [#allocation3], 1
    %s1692 = scalar_lea.sflag [#allocation3], 1
    %1693 = vsyncpa %s1692, 1

</llo_original>
